<compile_context>
chip_gen: v6e
topology: v6e:2x2x1
jax: 0.10.0
libtpu: 0.0.40
codegen_flags: <defaults>
</compile_context>

<pallas_src>
import functools

import jax
import jax.numpy as jnp
from jax.experimental import pallas as pl
from jax.experimental.pallas import tpu as pltpu

EPS = 1e-5


def mlp_kernel(x_ref,
               w1_ref, b1_ref,
               w2_ref, b2_ref,
               w3_ref, b3_ref,
               w4_ref, b4_ref,
               o_ref,
               s1_ref, ss1_ref, s2_ref, ss2_ref,
               *, batch_size, tile_b, needs_mask):
    phase = pl.program_id(0)   # 0: BN1 stats, 1: BN2 stats, 2: final output
    tile = pl.program_id(1)    # batch tile
    inv_b = 1.0 / float(batch_size)

    def linear_relu(h, w_ref, b_ref):
        y = jnp.dot(h, w_ref[...], preferred_element_type=jnp.float32) + b_ref[...]
        return jnp.maximum(y, 0.0)

    def accumulate(h, s_ref, ss_ref):
        # One-pass sum / sum-of-squares over valid batch rows.
        def add(hm):
            s_ref[...] += jnp.sum(hm, axis=0, keepdims=True)
            ss_ref[...] += jnp.sum(hm * hm, axis=0, keepdims=True)

        if needs_mask:
            # Only the LAST tile is partial; full tiles skip all mask work.
            is_last = tile == pl.num_programs(1) - 1

            @pl.when(jnp.logical_not(is_last))
            def _full():
                add(h)

            @pl.when(is_last)
            def _partial():
                rows = tile * tile_b + jax.lax.broadcasted_iota(
                    jnp.int32, (tile_b, 1), 0)
                # jnp.where (not multiply) so undefined tail rows can never
                # poison the statistics with 0*Inf = NaN.
                add(jnp.where(rows < batch_size, h, 0.0))
        else:
            add(h)

    def finalize_stats(s_ref, ss_ref):
        # Convert (sum, sumsq) -> (mu, rsqrt(var+eps)) in place, once per phase.
        mu = s_ref[...] * inv_b
        var = jnp.maximum(ss_ref[...] * inv_b - mu * mu, 0.0)
        s_ref[...] = mu
        ss_ref[...] = jax.lax.rsqrt(var + EPS)

    def normalize(h, s_ref, ss_ref):
        # gamma/beta are folded into the following Linear by the wrapper.
        return (h - s_ref[...]) * ss_ref[...]

    @pl.when((phase == 0) & (tile == 0))
    def _init():
        s1_ref[...] = jnp.zeros_like(s1_ref)
        ss1_ref[...] = jnp.zeros_like(ss1_ref)
        s2_ref[...] = jnp.zeros_like(s2_ref)
        ss2_ref[...] = jnp.zeros_like(ss2_ref)

    @pl.when((phase == 1) & (tile == 0))
    def _finalize_bn1():
        finalize_stats(s1_ref, ss1_ref)

    @pl.when((phase == 2) & (tile == 0))
    def _finalize_bn2():
        finalize_stats(s2_ref, ss2_ref)

    x = x_ref[...]  # f32

    @pl.when(phase == 0)
    def _phase0():
        h1 = linear_relu(x, w1_ref, b1_ref)
        accumulate(h1, s1_ref, ss1_ref)

    @pl.when(phase == 1)
    def _phase1():
        h1 = linear_relu(x, w1_ref, b1_ref)
        h1n = normalize(h1, s1_ref, ss1_ref)
        h2 = linear_relu(h1n, w2_ref, b2_ref)
        accumulate(h2, s2_ref, ss2_ref)

    @pl.when(phase == 2)
    def _phase2():
        h1 = linear_relu(x, w1_ref, b1_ref)
        h1n = normalize(h1, s1_ref, ss1_ref)
        h2 = linear_relu(h1n, w2_ref, b2_ref)
        h2n = normalize(h2, s2_ref, ss2_ref)
        h3 = linear_relu(h2n, w3_ref, b3_ref)
        out = jnp.dot(h3, w4_ref[...],
                      preferred_element_type=jnp.float32) + b4_ref[...]
        o_ref[...] = out.astype(o_ref.dtype)
    # o_ref is only written in phase 2; phase is the OUTERMOST grid axis, so
    # phase 2 is the last visit of each tile and overwrites the (garbage)
    # writebacks from phases 0/1.  With out_dim this small the extra writeback
    # traffic is negligible.


def _auto_tile_rows(batch, input_dim, out_dim,
                    vmem_budget_bytes=24 * 1024 * 1024, max_tile=2048):
    """Pick the batch tile: whole batch if it fits VMEM, else a large tile.

    Conservative per-row f32 VMEM estimate: double-buffered x block +
    double-buffered output block + live activations (h1/h1n + h2/h2n + h3).
    Budget is kept under the 32 MiB scoped default (valid on v7x too).
    """
    per_row = (2 * input_dim + 2 * out_dim + (2 * 128 + 2 * 64 + 32)) * 4
    if batch * per_row <= vmem_budget_bytes:
        return batch                      # single resident tile, grid = 3 steps
    tb = max_tile
    while tb > 8 and tb * per_row > vmem_budget_bytes:
        tb //= 2
    return max(tb, 8)


def regression_nn_forward(x, params, tile_b=None):
    """Fused MLP forward. x: (B, input_dim) float32 -> (B, output_dim) float32."""
    B, input_dim = x.shape
    out_dim = params["w4"].shape[1]

    # Fold BN affine (gamma, beta) into the following Linear (f32, once, outside
    # the kernel), so the kernel only does (h - mu) * rsqrt(var + eps).
    w2 = params["w2"] * params["g1"].T                      # (128, 64)
    b2 = params["b2"] + params["be1"] @ params["w2"]        # (1, 64)
    w3 = params["w3"] * params["g2"].T                      # (64, 32)
    b3 = params["b3"] + params["be2"] @ params["w3"]        # (1, 32)
    w1, b1 = params["w1"], params["b1"]
    w4, b4 = params["w4"], params["b4"]

    # Batch tiling: whole batch as one tile whenever it fits VMEM (TB == B is
    # always legal: a block dim equal to the full array dim needs no (8,128)
    # alignment).  No wrapper-side padding: ragged batches use partial edge
    # blocks + an in-kernel mask on the last tile only.
    if tile_b is None:
        TB = _auto_tile_rows(B, input_dim, out_dim)
    else:
        TB = B if tile_b >= B else max((tile_b // 8) * 8, 8)
    num_tiles = pl.cdiv(B, TB)
    needs_mask = (B % TB) != 0

    kernel = functools.partial(
        mlp_kernel, batch_size=B, tile_b=TB, needs_mask=needs_mask)

    const = lambda p, i: (0, 0)   # weights/biases stay VMEM-resident
    grid_spec = pltpu.PrefetchScalarGridSpec(
        num_scalar_prefetch=0,
        grid=(3, num_tiles),
        in_specs=[
            pl.BlockSpec((TB, input_dim), lambda p, i: (i, 0)),   # x tile
            pl.BlockSpec(w1.shape, const), pl.BlockSpec(b1.shape, const),
            pl.BlockSpec(w2.shape, const), pl.BlockSpec(b2.shape, const),
            pl.BlockSpec(w3.shape, const), pl.BlockSpec(b3.shape, const),
            pl.BlockSpec(w4.shape, const), pl.BlockSpec(b4.shape, const),
        ],
        out_specs=pl.BlockSpec((TB, out_dim), lambda p, i: (i, 0)),
        scratch_shapes=[
            pltpu.VMEM((1, 128), jnp.float32),   # sum(h1)   -> mu1 after finalize
            pltpu.VMEM((1, 128), jnp.float32),   # sum(h1^2) -> inv_std1
            pltpu.VMEM((1, 64), jnp.float32),    # sum(h2)   -> mu2
            pltpu.VMEM((1, 64), jnp.float32),    # sum(h2^2) -> inv_std2
        ],
    )

    return pl.pallas_call(
        kernel,
        out_shape=jax.ShapeDtypeStruct((B, out_dim), jnp.float32),
        grid_spec=grid_spec,
        compiler_params=pltpu.CompilerParams(
            # Both axes carry cross-step state (phase ordering + global BN
            # statistics in scratch), so neither may be "parallel".
            dimension_semantics=("arbitrary", "arbitrary"),
            vmem_limit_bytes=32 * 1024 * 1024,
        ),
    )(x, w1, b1, w2, b2, w3, b3, w4, b4)


def init_params(key, input_dim, output_dim):
    """Deterministic parameter init matching the module's shapes.

    Linear weights are stored as (in_features, out_features) — the transpose of
    PyTorch's (out, in) layout — so the kernel does x @ W.
    """
    dims = [(input_dim, 128), (128, 64), (64, 32), (32, output_dim)]
    keys = jax.random.split(key, 8)
    params = {}
    for i, (fan_in, fan_out) in enumerate(dims, start=1):
        bound = 1.0 / jnp.sqrt(fan_in)
        params[f"w{i}"] = jax.random.uniform(
            keys[2 * (i - 1)], (fan_in, fan_out), jnp.float32, -bound, bound)
        params[f"b{i}"] = jax.random.uniform(
            keys[2 * (i - 1) + 1], (1, fan_out), jnp.float32, -bound, bound)
    # BatchNorm affine params: gamma=1, beta=0 (PyTorch default init).
    params["g1"] = jnp.ones((1, 128), jnp.float32)
    params["be1"] = jnp.zeros((1, 128), jnp.float32)
    params["g2"] = jnp.ones((1, 64), jnp.float32)
    params["be2"] = jnp.zeros((1, 64), jnp.float32)
    return params


def reference_forward(x, params):
    """Pure-JAX f32 reference (training-mode BN, biased variance)."""
    def bn(h, g, b):
        mu = jnp.mean(h, axis=0, keepdims=True)
        var = jnp.mean((h - mu) ** 2, axis=0, keepdims=True)
        return (h - mu) * jax.lax.rsqrt(var + EPS) * g + b
    h = jnp.maximum(x @ params["w1"] + params["b1"], 0.0)
    h = bn(h, params["g1"], params["be1"])
    h = jnp.maximum(h @ params["w2"] + params["b2"], 0.0)
    h = bn(h, params["g2"], params["be2"])
    h = jnp.maximum(h @ params["w3"] + params["b3"], 0.0)
    return h @ params["w4"] + params["b4"]


def _check(out, ref, tag):
    assert out.shape == ref.shape, (tag, out.shape, ref.shape)
    assert out.dtype == jnp.float32, (tag, out.dtype)
    assert bool(jnp.all(jnp.isfinite(out))), tag
    ok = bool(jnp.all(jnp.abs(out - ref) <= 5e-2 + 5e-2 * jnp.abs(ref)))
    assert ok, (f"{tag}: mismatch vs reference, max abs diff "
                f"{float(jnp.max(jnp.abs(out - ref)))}")


if __name__ == "__main__":
    input_dim = 32
    output_dim = 4

    key = jax.random.PRNGKey(0)
    k_x, k_p, k_x2 = jax.random.split(key, 3)
    params = init_params(k_p, input_dim, output_dim)

    # Case 1: small batch -> single resident tile (grid = 3 steps, no mask).
    batch = 8
    x = jax.random.normal(k_x, (batch, input_dim), jnp.float32)
    out = jax.block_until_ready(regression_nn_forward(x, params))
    _check(out, reference_forward(x, params), "single-tile")

    # Case 2: ragged batch with forced tiling -> exercises partial edge block
    # and the last-tile-only jnp.where mask (no wrapper-side padding).
    batch2 = 20
    x2 = jax.random.normal(k_x2, (batch2, input_dim), jnp.float32)
    out2 = jax.block_until_ready(regression_nn_forward(x2, params, tile_b=8))
    _check(out2, reference_forward(x2, params), "ragged-tiled")

    print("KERNEL_OK")
</pallas_src>

<mosaic_0001>
module attributes {stable_mosaic.version = 11 : i64} {
  func.func @mlp_kernel(%arg0: i32, %arg1: i32, %arg2: memref<8x32xf32, #tpu.memory_space<vmem>>, %arg3: memref<32x128xf32, #tpu.memory_space<vmem>>, %arg4: memref<1x128xf32, #tpu.memory_space<vmem>>, %arg5: memref<128x64xf32, #tpu.memory_space<vmem>>, %arg6: memref<1x64xf32, #tpu.memory_space<vmem>>, %arg7: memref<64x32xf32, #tpu.memory_space<vmem>>, %arg8: memref<1x32xf32, #tpu.memory_space<vmem>>, %arg9: memref<32x4xf32, #tpu.memory_space<vmem>>, %arg10: memref<1x4xf32, #tpu.memory_space<vmem>>, %arg11: memref<8x4xf32, #tpu.memory_space<vmem>>, %arg12: memref<1x128xf32, #tpu.memory_space<vmem>>, %arg13: memref<1x128xf32, #tpu.memory_space<vmem>>, %arg14: memref<1x64xf32, #tpu.memory_space<vmem>>, %arg15: memref<1x64xf32, #tpu.memory_space<vmem>>) attributes {dimension_semantics = [#tpu.dimension_semantics<arbitrary>, #tpu.dimension_semantics<arbitrary>], iteration_bounds = array<i64: 3, 1>, scalar_prefetch = 0 : i64, scratch_operands = 4 : i64, tpu.core_type = #tpu.core_type<tc>, window_params = [{transform_indices = @transform_0, window_bounds = array<i64: 8, 32>}, {pipeline_mode = #tpu.pipeline_mode<synchronous>, transform_indices = @transform_1, window_bounds = array<i64: 32, 128>}, {pipeline_mode = #tpu.pipeline_mode<synchronous>, transform_indices = @transform_2, window_bounds = array<i64: 1, 128>}, {pipeline_mode = #tpu.pipeline_mode<synchronous>, transform_indices = @transform_3, window_bounds = array<i64: 128, 64>}, {pipeline_mode = #tpu.pipeline_mode<synchronous>, transform_indices = @transform_4, window_bounds = array<i64: 1, 64>}, {pipeline_mode = #tpu.pipeline_mode<synchronous>, transform_indices = @transform_5, window_bounds = array<i64: 64, 32>}, {pipeline_mode = #tpu.pipeline_mode<synchronous>, transform_indices = @transform_6, window_bounds = array<i64: 1, 32>}, {pipeline_mode = #tpu.pipeline_mode<synchronous>, transform_indices = @transform_7, window_bounds = array<i64: 32, 4>}, {pipeline_mode = #tpu.pipeline_mode<synchronous>, transform_indices = @transform_8, window_bounds = array<i64: 1, 4>}, {transform_indices = @transform_9, window_bounds = array<i64: 8, 4>}]} {
    %c0_i32 = arith.constant 0 : i32
    %0 = arith.cmpi eq, %arg0, %c0_i32 : i32
    %c0_i32_0 = arith.constant 0 : i32
    %1 = arith.cmpi eq, %arg1, %c0_i32_0 : i32
    %2 = arith.andi %0, %1 : i1
    %3 = arith.extui %2 : i1 to i32
    %c0_i32_1 = arith.constant 0 : i32
    %4 = arith.cmpi ne, %3, %c0_i32_1 : i32
    scf.if %4 {
      %cst = arith.constant 0.000000e+00 : f32
      %25 = vector.broadcast %cst : f32 to vector<1x128xf32>
      %c0_13 = arith.constant 0 : index
      %c0_14 = arith.constant 0 : index
      %26 = vector.load %arg12[%c0_13, %c0_14] : memref<1x128xf32, #tpu.memory_space<vmem>>, vector<1x128xf32>
      tpu.vector_store %arg12[%c0_13, %c0_14], %25 {strides = array<i32>} : memref<1x128xf32, #tpu.memory_space<vmem>>, vector<1x128xf32>,
      %cst_15 = arith.constant 0.000000e+00 : f32
      %27 = vector.broadcast %cst_15 : f32 to vector<1x128xf32>
      %c0_16 = arith.constant 0 : index
      %c0_17 = arith.constant 0 : index
      %28 = vector.load %arg13[%c0_16, %c0_17] : memref<1x128xf32, #tpu.memory_space<vmem>>, vector<1x128xf32>
      tpu.vector_store %arg13[%c0_16, %c0_17], %27 {strides = array<i32>} : memref<1x128xf32, #tpu.memory_space<vmem>>, vector<1x128xf32>,
      %cst_18 = arith.constant 0.000000e+00 : f32
      %29 = vector.broadcast %cst_18 : f32 to vector<1x64xf32>
      %c0_19 = arith.constant 0 : index
      %c0_20 = arith.constant 0 : index
      %30 = vector.load %arg14[%c0_19, %c0_20] : memref<1x64xf32, #tpu.memory_space<vmem>>, vector<1x64xf32>
      tpu.vector_store %arg14[%c0_19, %c0_20], %29 {strides = array<i32>} : memref<1x64xf32, #tpu.memory_space<vmem>>, vector<1x64xf32>,
      %cst_21 = arith.constant 0.000000e+00 : f32
      %31 = vector.broadcast %cst_21 : f32 to vector<1x64xf32>
      %c0_22 = arith.constant 0 : index
      %c0_23 = arith.constant 0 : index
      %32 = vector.load %arg15[%c0_22, %c0_23] : memref<1x64xf32, #tpu.memory_space<vmem>>, vector<1x64xf32>
      tpu.vector_store %arg15[%c0_22, %c0_23], %31 {strides = array<i32>} : memref<1x64xf32, #tpu.memory_space<vmem>>, vector<1x64xf32>,
    } else {
    }
    %c1_i32 = arith.constant 1 : i32
    %5 = arith.cmpi eq, %arg0, %c1_i32 : i32
    %c0_i32_2 = arith.constant 0 : i32
    %6 = arith.cmpi eq, %arg1, %c0_i32_2 : i32
    %7 = arith.andi %5, %6 : i1
    %8 = arith.extui %7 : i1 to i32
    %c0_i32_3 = arith.constant 0 : i32
    %9 = arith.cmpi ne, %8, %c0_i32_3 : i32
    scf.if %9 {
      %c0_13 = arith.constant 0 : index
      %c0_14 = arith.constant 0 : index
      %25 = vector.load %arg12[%c0_13, %c0_14] : memref<1x128xf32, #tpu.memory_space<vmem>>, vector<1x128xf32>
      %cst = arith.constant 1.250000e-01 : f32
      %26 = vector.broadcast %cst : f32 to vector<1x128xf32>
      %27 = arith.mulf %25, %26 : vector<1x128xf32>
      %c0_15 = arith.constant 0 : index
      %c0_16 = arith.constant 0 : index
      %28 = vector.load %arg13[%c0_15, %c0_16] : memref<1x128xf32, #tpu.memory_space<vmem>>, vector<1x128xf32>
      %cst_17 = arith.constant 1.250000e-01 : f32
      %29 = vector.broadcast %cst_17 : f32 to vector<1x128xf32>
      %30 = arith.mulf %28, %29 : vector<1x128xf32>
      %31 = arith.mulf %27, %27 : vector<1x128xf32>
      %32 = arith.subf %30, %31 : vector<1x128xf32>
      %cst_18 = arith.constant 0.000000e+00 : f32
      %33 = vector.broadcast %cst_18 : f32 to vector<1x128xf32>
      %34 = arith.maximumf %32, %33 : vector<1x128xf32>
      %c0_19 = arith.constant 0 : index
      %c0_20 = arith.constant 0 : index
      %35 = vector.load %arg12[%c0_19, %c0_20] : memref<1x128xf32, #tpu.memory_space<vmem>>, vector<1x128xf32>
      tpu.vector_store %arg12[%c0_19, %c0_20], %27 {strides = array<i32>} : memref<1x128xf32, #tpu.memory_space<vmem>>, vector<1x128xf32>,
      %cst_21 = arith.constant 9.99999974E-6 : f32
      %36 = vector.broadcast %cst_21 : f32 to vector<1x128xf32>
      %37 = arith.addf %34, %36 : vector<1x128xf32>
      %38 = math.rsqrt %37 : vector<1x128xf32>
      %c0_22 = arith.constant 0 : index
      %c0_23 = arith.constant 0 : index
      %39 = vector.load %arg13[%c0_22, %c0_23] : memref<1x128xf32, #tpu.memory_space<vmem>>, vector<1x128xf32>
      tpu.vector_store %arg13[%c0_22, %c0_23], %38 {strides = array<i32>} : memref<1x128xf32, #tpu.memory_space<vmem>>, vector<1x128xf32>,
    } else {
    }
    %c2_i32 = arith.constant 2 : i32
    %10 = arith.cmpi eq, %arg0, %c2_i32 : i32
    %c0_i32_4 = arith.constant 0 : i32
    %11 = arith.cmpi eq, %arg1, %c0_i32_4 : i32
    %12 = arith.andi %10, %11 : i1
    %13 = arith.extui %12 : i1 to i32
    %c0_i32_5 = arith.constant 0 : i32
    %14 = arith.cmpi ne, %13, %c0_i32_5 : i32
    scf.if %14 {
      %c0_13 = arith.constant 0 : index
      %c0_14 = arith.constant 0 : index
      %25 = vector.load %arg14[%c0_13, %c0_14] : memref<1x64xf32, #tpu.memory_space<vmem>>, vector<1x64xf32>
      %cst = arith.constant 1.250000e-01 : f32
      %26 = vector.broadcast %cst : f32 to vector<1x64xf32>
      %27 = arith.mulf %25, %26 : vector<1x64xf32>
      %c0_15 = arith.constant 0 : index
      %c0_16 = arith.constant 0 : index
      %28 = vector.load %arg15[%c0_15, %c0_16] : memref<1x64xf32, #tpu.memory_space<vmem>>, vector<1x64xf32>
      %cst_17 = arith.constant 1.250000e-01 : f32
      %29 = vector.broadcast %cst_17 : f32 to vector<1x64xf32>
      %30 = arith.mulf %28, %29 : vector<1x64xf32>
      %31 = arith.mulf %27, %27 : vector<1x64xf32>
      %32 = arith.subf %30, %31 : vector<1x64xf32>
      %cst_18 = arith.constant 0.000000e+00 : f32
      %33 = vector.broadcast %cst_18 : f32 to vector<1x64xf32>
      %34 = arith.maximumf %32, %33 : vector<1x64xf32>
      %c0_19 = arith.constant 0 : index
      %c0_20 = arith.constant 0 : index
      %35 = vector.load %arg14[%c0_19, %c0_20] : memref<1x64xf32, #tpu.memory_space<vmem>>, vector<1x64xf32>
      tpu.vector_store %arg14[%c0_19, %c0_20], %27 {strides = array<i32>} : memref<1x64xf32, #tpu.memory_space<vmem>>, vector<1x64xf32>,
      %cst_21 = arith.constant 9.99999974E-6 : f32
      %36 = vector.broadcast %cst_21 : f32 to vector<1x64xf32>
      %37 = arith.addf %34, %36 : vector<1x64xf32>
      %38 = math.rsqrt %37 : vector<1x64xf32>
      %c0_22 = arith.constant 0 : index
      %c0_23 = arith.constant 0 : index
      %39 = vector.load %arg15[%c0_22, %c0_23] : memref<1x64xf32, #tpu.memory_space<vmem>>, vector<1x64xf32>
      tpu.vector_store %arg15[%c0_22, %c0_23], %38 {strides = array<i32>} : memref<1x64xf32, #tpu.memory_space<vmem>>, vector<1x64xf32>,
    } else {
    }
    %c0 = arith.constant 0 : index
    %c0_6 = arith.constant 0 : index
    %15 = vector.load %arg2[%c0, %c0_6] : memref<8x32xf32, #tpu.memory_space<vmem>>, vector<8x32xf32>
    %c0_i32_7 = arith.constant 0 : i32
    %16 = arith.cmpi eq, %arg0, %c0_i32_7 : i32
    %17 = arith.extui %16 : i1 to i32
    %c0_i32_8 = arith.constant 0 : i32
    %18 = arith.cmpi ne, %17, %c0_i32_8 : i32
    scf.if %18 {
      %c0_13 = arith.constant 0 : index
      %c0_14 = arith.constant 0 : index
      %25 = vector.load %arg3[%c0_13, %c0_14] : memref<32x128xf32, #tpu.memory_space<vmem>>, vector<32x128xf32>
      %cst = arith.constant dense<0.000000e+00> : vector<8x128xf32>
      %26 = tpu.matmul %15, %25, %cst {dimension_numbers = #tpu.dot_dimension_numbers<[1], [0], [0], [1], [0, 0, 1, 1], [], []>} : vector<8x32xf32>, vector<32x128xf32>, vector<8x128xf32> -> vector<8x128xf32>
      %c0_15 = arith.constant 0 : index
      %c0_16 = arith.constant 0 : index
      %27 = vector.load %arg4[%c0_15, %c0_16] : memref<1x128xf32, #tpu.memory_space<vmem>>, vector<1x128xf32>
      %28 = vector.broadcast %27 : vector<1x128xf32> to vector<8x128xf32>
      %29 = arith.addf %26, %28 : vector<8x128xf32>
      %cst_17 = arith.constant 0.000000e+00 : f32
      %30 = vector.broadcast %cst_17 : f32 to vector<8x128xf32>
      %31 = arith.maximumf %29, %30 : vector<8x128xf32>
      %c0_18 = arith.constant 0 : index
      %c0_19 = arith.constant 0 : index
      %32 = vector.load %arg12[%c0_18, %c0_19] : memref<1x128xf32, #tpu.memory_space<vmem>>, vector<1x128xf32>
      %cst_20 = arith.constant dense<0.000000e+00> : vector<128xf32>
      %33 = vector.multi_reduction <add>, %31, %cst_20 [0] : vector<8x128xf32> to vector<128xf32>
      %34 = vector.shape_cast %33 : vector<128xf32> to vector<1x128xf32>
      %35 = arith.addf %32, %34 : vector<1x128xf32>
      %c0_21 = arith.constant 0 : index
      %c0_22 = arith.constant 0 : index
      %36 = vector.load %arg12[%c0_21, %c0_22] : memref<1x128xf32, #tpu.memory_space<vmem>>, vector<1x128xf32>
      tpu.vector_store %arg12[%c0_21, %c0_22], %35 {strides = array<i32>} : memref<1x128xf32, #tpu.memory_space<vmem>>, vector<1x128xf32>,
      %c0_23 = arith.constant 0 : index
      %c0_24 = arith.constant 0 : index
      %37 = vector.load %arg13[%c0_23, %c0_24] : memref<1x128xf32, #tpu.memory_space<vmem>>, vector<1x128xf32>
      %38 = arith.mulf %31, %31 : vector<8x128xf32>
      %cst_25 = arith.constant dense<0.000000e+00> : vector<128xf32>
      %39 = vector.multi_reduction <add>, %38, %cst_25 [0] : vector<8x128xf32> to vector<128xf32>
      %40 = vector.shape_cast %39 : vector<128xf32> to vector<1x128xf32>
      %41 = arith.addf %37, %40 : vector<1x128xf32>
      %c0_26 = arith.constant 0 : index
      %c0_27 = arith.constant 0 : index
      %42 = vector.load %arg13[%c0_26, %c0_27] : memref<1x128xf32, #tpu.memory_space<vmem>>, vector<1x128xf32>
      tpu.vector_store %arg13[%c0_26, %c0_27], %41 {strides = array<i32>} : memref<1x128xf32, #tpu.memory_space<vmem>>, vector<1x128xf32>,
    } else {
    }
    %c1_i32_9 = arith.constant 1 : i32
    %19 = arith.cmpi eq, %arg0, %c1_i32_9 : i32
    %20 = arith.extui %19 : i1 to i32
    %c0_i32_10 = arith.constant 0 : i32
    %21 = arith.cmpi ne, %20, %c0_i32_10 : i32
    scf.if %21 {
      %c0_13 = arith.constant 0 : index
      %c0_14 = arith.constant 0 : index
      %25 = vector.load %arg3[%c0_13, %c0_14] : memref<32x128xf32, #tpu.memory_space<vmem>>, vector<32x128xf32>
      %cst = arith.constant dense<0.000000e+00> : vector<8x128xf32>
      %26 = tpu.matmul %15, %25, %cst {dimension_numbers = #tpu.dot_dimension_numbers<[1], [0], [0], [1], [0, 0, 1, 1], [], []>} : vector<8x32xf32>, vector<32x128xf32>, vector<8x128xf32> -> vector<8x128xf32>
      %c0_15 = arith.constant 0 : index
      %c0_16 = arith.constant 0 : index
      %27 = vector.load %arg4[%c0_15, %c0_16] : memref<1x128xf32, #tpu.memory_space<vmem>>, vector<1x128xf32>
      %28 = vector.broadcast %27 : vector<1x128xf32> to vector<8x128xf32>
      %29 = arith.addf %26, %28 : vector<8x128xf32>
      %cst_17 = arith.constant 0.000000e+00 : f32
      %30 = vector.broadcast %cst_17 : f32 to vector<8x128xf32>
      %31 = arith.maximumf %29, %30 : vector<8x128xf32>
      %c0_18 = arith.constant 0 : index
      %c0_19 = arith.constant 0 : index
      %32 = vector.load %arg12[%c0_18, %c0_19] : memref<1x128xf32, #tpu.memory_space<vmem>>, vector<1x128xf32>
      %33 = vector.broadcast %32 : vector<1x128xf32> to vector<8x128xf32>
      %34 = arith.subf %31, %33 : vector<8x128xf32>
      %c0_20 = arith.constant 0 : index
      %c0_21 = arith.constant 0 : index
      %35 = vector.load %arg13[%c0_20, %c0_21] : memref<1x128xf32, #tpu.memory_space<vmem>>, vector<1x128xf32>
      %36 = vector.broadcast %35 : vector<1x128xf32> to vector<8x128xf32>
      %37 = arith.mulf %34, %36 : vector<8x128xf32>
      %c0_22 = arith.constant 0 : index
      %c0_23 = arith.constant 0 : index
      %38 = vector.load %arg5[%c0_22, %c0_23] : memref<128x64xf32, #tpu.memory_space<vmem>>, vector<128x64xf32>
      %cst_24 = arith.constant dense<0.000000e+00> : vector<8x64xf32>
      %39 = tpu.matmul %37, %38, %cst_24 {dimension_numbers = #tpu.dot_dimension_numbers<[1], [0], [0], [1], [0, 0, 1, 1], [], []>} : vector<8x128xf32>, vector<128x64xf32>, vector<8x64xf32> -> vector<8x64xf32>
      %c0_25 = arith.constant 0 : index
      %c0_26 = arith.constant 0 : index
      %40 = vector.load %arg6[%c0_25, %c0_26] : memref<1x64xf32, #tpu.memory_space<vmem>>, vector<1x64xf32>
      %41 = vector.broadcast %40 : vector<1x64xf32> to vector<8x64xf32>
      %42 = arith.addf %39, %41 : vector<8x64xf32>
      %cst_27 = arith.constant 0.000000e+00 : f32
      %43 = vector.broadcast %cst_27 : f32 to vector<8x64xf32>
      %44 = arith.maximumf %42, %43 : vector<8x64xf32>
      %c0_28 = arith.constant 0 : index
      %c0_29 = arith.constant 0 : index
      %45 = vector.load %arg14[%c0_28, %c0_29] : memref<1x64xf32, #tpu.memory_space<vmem>>, vector<1x64xf32>
      %cst_30 = arith.constant dense<0.000000e+00> : vector<64xf32>
      %46 = vector.multi_reduction <add>, %44, %cst_30 [0] : vector<8x64xf32> to vector<64xf32>
      %47 = vector.shape_cast %46 : vector<64xf32> to vector<1x64xf32>
      %48 = arith.addf %45, %47 : vector<1x64xf32>
      %c0_31 = arith.constant 0 : index
      %c0_32 = arith.constant 0 : index
      %49 = vector.load %arg14[%c0_31, %c0_32] : memref<1x64xf32, #tpu.memory_space<vmem>>, vector<1x64xf32>
      tpu.vector_store %arg14[%c0_31, %c0_32], %48 {strides = array<i32>} : memref<1x64xf32, #tpu.memory_space<vmem>>, vector<1x64xf32>,
      %c0_33 = arith.constant 0 : index
      %c0_34 = arith.constant 0 : index
      %50 = vector.load %arg15[%c0_33, %c0_34] : memref<1x64xf32, #tpu.memory_space<vmem>>, vector<1x64xf32>
      %51 = arith.mulf %44, %44 : vector<8x64xf32>
      %cst_35 = arith.constant dense<0.000000e+00> : vector<64xf32>
      %52 = vector.multi_reduction <add>, %51, %cst_35 [0] : vector<8x64xf32> to vector<64xf32>
      %53 = vector.shape_cast %52 : vector<64xf32> to vector<1x64xf32>
      %54 = arith.addf %50, %53 : vector<1x64xf32>
      %c0_36 = arith.constant 0 : index
      %c0_37 = arith.constant 0 : index
      %55 = vector.load %arg15[%c0_36, %c0_37] : memref<1x64xf32, #tpu.memory_space<vmem>>, vector<1x64xf32>
      tpu.vector_store %arg15[%c0_36, %c0_37], %54 {strides = array<i32>} : memref<1x64xf32, #tpu.memory_space<vmem>>, vector<1x64xf32>,
    } else {
    }
    %c2_i32_11 = arith.constant 2 : i32
    %22 = arith.cmpi eq, %arg0, %c2_i32_11 : i32
    %23 = arith.extui %22 : i1 to i32
    %c0_i32_12 = arith.constant 0 : i32
    %24 = arith.cmpi ne, %23, %c0_i32_12 : i32
    scf.if %24 {
      %c0_13 = arith.constant 0 : index
      %c0_14 = arith.constant 0 : index
      %25 = vector.load %arg3[%c0_13, %c0_14] : memref<32x128xf32, #tpu.memory_space<vmem>>, vector<32x128xf32>
      %cst = arith.constant dense<0.000000e+00> : vector<8x128xf32>
      %26 = tpu.matmul %15, %25, %cst {dimension_numbers = #tpu.dot_dimension_numbers<[1], [0], [0], [1], [0, 0, 1, 1], [], []>} : vector<8x32xf32>, vector<32x128xf32>, vector<8x128xf32> -> vector<8x128xf32>
      %c0_15 = arith.constant 0 : index
      %c0_16 = arith.constant 0 : index
      %27 = vector.load %arg4[%c0_15, %c0_16] : memref<1x128xf32, #tpu.memory_space<vmem>>, vector<1x128xf32>
      %28 = vector.broadcast %27 : vector<1x128xf32> to vector<8x128xf32>
      %29 = arith.addf %26, %28 : vector<8x128xf32>
      %cst_17 = arith.constant 0.000000e+00 : f32
      %30 = vector.broadcast %cst_17 : f32 to vector<8x128xf32>
      %31 = arith.maximumf %29, %30 : vector<8x128xf32>
      %c0_18 = arith.constant 0 : index
      %c0_19 = arith.constant 0 : index
      %32 = vector.load %arg12[%c0_18, %c0_19] : memref<1x128xf32, #tpu.memory_space<vmem>>, vector<1x128xf32>
      %33 = vector.broadcast %32 : vector<1x128xf32> to vector<8x128xf32>
      %34 = arith.subf %31, %33 : vector<8x128xf32>
      %c0_20 = arith.constant 0 : index
      %c0_21 = arith.constant 0 : index
      %35 = vector.load %arg13[%c0_20, %c0_21] : memref<1x128xf32, #tpu.memory_space<vmem>>, vector<1x128xf32>
      %36 = vector.broadcast %35 : vector<1x128xf32> to vector<8x128xf32>
      %37 = arith.mulf %34, %36 : vector<8x128xf32>
      %c0_22 = arith.constant 0 : index
      %c0_23 = arith.constant 0 : index
      %38 = vector.load %arg5[%c0_22, %c0_23] : memref<128x64xf32, #tpu.memory_space<vmem>>, vector<128x64xf32>
      %cst_24 = arith.constant dense<0.000000e+00> : vector<8x64xf32>
      %39 = tpu.matmul %37, %38, %cst_24 {dimension_numbers = #tpu.dot_dimension_numbers<[1], [0], [0], [1], [0, 0, 1, 1], [], []>} : vector<8x128xf32>, vector<128x64xf32>, vector<8x64xf32> -> vector<8x64xf32>
      %c0_25 = arith.constant 0 : index
      %c0_26 = arith.constant 0 : index
      %40 = vector.load %arg6[%c0_25, %c0_26] : memref<1x64xf32, #tpu.memory_space<vmem>>, vector<1x64xf32>
      %41 = vector.broadcast %40 : vector<1x64xf32> to vector<8x64xf32>
      %42 = arith.addf %39, %41 : vector<8x64xf32>
      %cst_27 = arith.constant 0.000000e+00 : f32
      %43 = vector.broadcast %cst_27 : f32 to vector<8x64xf32>
      %44 = arith.maximumf %42, %43 : vector<8x64xf32>
      %c0_28 = arith.constant 0 : index
      %c0_29 = arith.constant 0 : index
      %45 = vector.load %arg14[%c0_28, %c0_29] : memref<1x64xf32, #tpu.memory_space<vmem>>, vector<1x64xf32>
      %46 = vector.broadcast %45 : vector<1x64xf32> to vector<8x64xf32>
      %47 = arith.subf %44, %46 : vector<8x64xf32>
      %c0_30 = arith.constant 0 : index
      %c0_31 = arith.constant 0 : index
      %48 = vector.load %arg15[%c0_30, %c0_31] : memref<1x64xf32, #tpu.memory_space<vmem>>, vector<1x64xf32>
      %49 = vector.broadcast %48 : vector<1x64xf32> to vector<8x64xf32>
      %50 = arith.mulf %47, %49 : vector<8x64xf32>
      %c0_32 = arith.constant 0 : index
      %c0_33 = arith.constant 0 : index
      %51 = vector.load %arg7[%c0_32, %c0_33] : memref<64x32xf32, #tpu.memory_space<vmem>>, vector<64x32xf32>
      %cst_34 = arith.constant dense<0.000000e+00> : vector<8x32xf32>
      %52 = tpu.matmul %50, %51, %cst_34 {dimension_numbers = #tpu.dot_dimension_numbers<[1], [0], [0], [1], [0, 0, 1, 1], [], []>} : vector<8x64xf32>, vector<64x32xf32>, vector<8x32xf32> -> vector<8x32xf32>
      %c0_35 = arith.constant 0 : index
      %c0_36 = arith.constant 0 : index
      %53 = vector.load %arg8[%c0_35, %c0_36] : memref<1x32xf32, #tpu.memory_space<vmem>>, vector<1x32xf32>
      %54 = vector.broadcast %53 : vector<1x32xf32> to vector<8x32xf32>
      %55 = arith.addf %52, %54 : vector<8x32xf32>
      %cst_37 = arith.constant 0.000000e+00 : f32
      %56 = vector.broadcast %cst_37 : f32 to vector<8x32xf32>
      %57 = arith.maximumf %55, %56 : vector<8x32xf32>
      %c0_38 = arith.constant 0 : index
      %c0_39 = arith.constant 0 : index
      %58 = vector.load %arg9[%c0_38, %c0_39] : memref<32x4xf32, #tpu.memory_space<vmem>>, vector<32x4xf32>
      %cst_40 = arith.constant dense<0.000000e+00> : vector<8x4xf32>
      %59 = tpu.matmul %57, %58, %cst_40 {dimension_numbers = #tpu.dot_dimension_numbers<[1], [0], [0], [1], [0, 0, 1, 1], [], []>} : vector<8x32xf32>, vector<32x4xf32>, vector<8x4xf32> -> vector<8x4xf32>
      %c0_41 = arith.constant 0 : index
      %c0_42 = arith.constant 0 : index
      %60 = vector.load %arg10[%c0_41, %c0_42] : memref<1x4xf32, #tpu.memory_space<vmem>>, vector<1x4xf32>
      %61 = vector.broadcast %60 : vector<1x4xf32> to vector<8x4xf32>
      %62 = arith.addf %59, %61 : vector<8x4xf32>
      %c0_43 = arith.constant 0 : index
      %c0_44 = arith.constant 0 : index
      %63 = vector.load %arg11[%c0_43, %c0_44] : memref<8x4xf32, #tpu.memory_space<vmem>>, vector<8x4xf32>
      tpu.vector_store %arg11[%c0_43, %c0_44], %62 {strides = array<i32>} : memref<8x4xf32, #tpu.memory_space<vmem>>, vector<8x4xf32>,
    } else {
    }
    return
  }
  func.func @transform_0(%arg0: i32, %arg1: i32) -> (i32, i32) {
    %c0_i32 = arith.constant 0 : i32
    %c0_i32_0 = arith.constant 0 : i32
    return %arg1, %c0_i32 : i32, i32
  }
  func.func @transform_1(%arg0: i32, %arg1: i32) -> (i32, i32) {
    %c0_i32 = arith.constant 0 : i32
    %c0_i32_0 = arith.constant 0 : i32
    %c0_i32_1 = arith.constant 0 : i32
    return %c0_i32, %c0_i32_0 : i32, i32
  }
  func.func @transform_2(%arg0: i32, %arg1: i32) -> (i32, i32) {
    %c0_i32 = arith.constant 0 : i32
    %c0_i32_0 = arith.constant 0 : i32
    %c0_i32_1 = arith.constant 0 : i32
    return %c0_i32, %c0_i32_0 : i32, i32
  }
  func.func @transform_3(%arg0: i32, %arg1: i32) -> (i32, i32) {
    %c0_i32 = arith.constant 0 : i32
    %c0_i32_0 = arith.constant 0 : i32
    %c0_i32_1 = arith.constant 0 : i32
    return %c0_i32, %c0_i32_0 : i32, i32
  }
  func.func @transform_4(%arg0: i32, %arg1: i32) -> (i32, i32) {
    %c0_i32 = arith.constant 0 : i32
    %c0_i32_0 = arith.constant 0 : i32
    %c0_i32_1 = arith.constant 0 : i32
    return %c0_i32, %c0_i32_0 : i32, i32
  }
  func.func @transform_5(%arg0: i32, %arg1: i32) -> (i32, i32) {
    %c0_i32 = arith.constant 0 : i32
    %c0_i32_0 = arith.constant 0 : i32
    %c0_i32_1 = arith.constant 0 : i32
    return %c0_i32, %c0_i32_0 : i32, i32
  }
  func.func @transform_6(%arg0: i32, %arg1: i32) -> (i32, i32) {
    %c0_i32 = arith.constant 0 : i32
    %c0_i32_0 = arith.constant 0 : i32
    %c0_i32_1 = arith.constant 0 : i32
    return %c0_i32, %c0_i32_0 : i32, i32
  }
  func.func @transform_7(%arg0: i32, %arg1: i32) -> (i32, i32) {
    %c0_i32 = arith.constant 0 : i32
    %c0_i32_0 = arith.constant 0 : i32
    %c0_i32_1 = arith.constant 0 : i32
    return %c0_i32, %c0_i32_0 : i32, i32
  }
  func.func @transform_8(%arg0: i32, %arg1: i32) -> (i32, i32) {
    %c0_i32 = arith.constant 0 : i32
    %c0_i32_0 = arith.constant 0 : i32
    %c0_i32_1 = arith.constant 0 : i32
    return %c0_i32, %c0_i32_0 : i32, i32
  }
  func.func @transform_9(%arg0: i32, %arg1: i32) -> (i32, i32) {
    %c0_i32 = arith.constant 0 : i32
    %c0_i32_0 = arith.constant 0 : i32
    return %arg1, %c0_i32 : i32, i32
  }
}

</mosaic_0001>

<llo_original>
// kernel: tpu_custom_call.1
$region0: #{tpu_custom_call.1}
  #allocation0 [shape = 'u32[]', space=smem, size = 0x4, offset = 0x4, fixed_abs, tag = 'smem constant byte address 0x4 - core index']
  #allocation1 [shape = 'u32[144,128]{1,0:T(1,128)}', space=vmem, size = 0x12000, scoped, tag = 'internal scratch']
  #allocation2 [shape = 'f32[1,128]{1,0:T(1,128)}', space=vmem, size = 0x200, scoped, tag = 'scratch operand']
  #allocation3 [shape = 'f32[1,128]{1,0:T(1,128)}', space=vmem, size = 0x200, scoped, tag = 'scratch operand']
  #allocation4 [shape = 'f32[1,64]{1,0:T(1,128)}', space=vmem, size = 0x200, scoped, tag = 'scratch operand']
  #allocation5 [shape = 'f32[1,64]{1,0:T(1,128)}', space=vmem, size = 0x200, scoped, tag = 'scratch operand']
  %s0 = inlined_call_operand.vmem [shape: f32[8,32], index: 0, kind: input, shape index: {}]
  %s1 = inlined_call_operand.vmem [shape: f32[32,128], index: 1, kind: input, shape index: {}]
  %s2 = inlined_call_operand.vmem [shape: f32[1,128], index: 2, kind: input, shape index: {}]
  %s3 = inlined_call_operand.vmem [shape: f32[128,64], index: 3, kind: input, shape index: {}]
  %s4 = inlined_call_operand.vmem [shape: f32[1,64], index: 4, kind: input, shape index: {}]
  %s5 = inlined_call_operand.vmem [shape: f32[64,32], index: 5, kind: input, shape index: {}]
  %s6 = inlined_call_operand.vmem [shape: f32[1,32], index: 6, kind: input, shape index: {}]
  %s7 = inlined_call_operand.vmem [shape: f32[32,4], index: 7, kind: input, shape index: {}]
  %s8 = inlined_call_operand.vmem [shape: f32[1,4], index: 8, kind: input, shape index: {}]
  %s9 = inlined_call_operand.vmem [shape: f32[8,4], index: 9, kind: output, shape index: {}]
  %s10 = sld [smem:[#allocation0]]
  $region93: #{tpu_custom_call.1} parent=0
    _
  %s12 = ssub.s32 1, %s10
  %s13 = scalar_select 0, %s12, %s10
  loop: start=0, step=1, limit=5
  $region2: #{tpu_custom_call.1} parent=0 // loop_pre_header
    _
  $region3: #{tpu_custom_call.1} parent=0 // loop_header
    %s15 = sphi 0, %s19
    %p16 = scmp.ge.s32.totalorder %s15, 5
    %s22 = sphi 0, %s34
    %s23 = sphi 0, %s30
    %s24 = sphi 0, %s22
    %s25 = sphi 0, %s23
    %s26 = sphi 0, %s24
    %s27 = sphi 0, %s25
    %s37 = sphi 0, %s39
    %s40 = sphi 0, %s37
    %s41 = sphi 0, %s40
    %s57 = sphi 0, %s41
    %s61 = sphi 0, %s61
    %s63 = sphi 0, %s61
    %s64 = sphi 0, %s63
    %s78 = sphi 0, %s64
    %s82 = sphi 0, %s82
    %s84 = sphi 0, %s82
    %s85 = sphi 0, %s84
    %s99 = sphi 0, %s85
    %s103 = sphi 0, %s103
    %s105 = sphi 0, %s103
    %s106 = sphi 0, %s105
    %s120 = sphi 0, %s106
    %s124 = sphi 0, %s124
    %s126 = sphi 0, %s124
    %s127 = sphi 0, %s126
    %s141 = sphi 0, %s127
    %s145 = sphi 0, %s145
    %s147 = sphi 0, %s145
    %s148 = sphi 0, %s147
    %s162 = sphi 0, %s148
    %s166 = sphi 0, %s166
    %s168 = sphi 0, %s166
    %s169 = sphi 0, %s168
    %s183 = sphi 0, %s169
    %s187 = sphi 0, %s187
    %s189 = sphi 0, %s187
    %s190 = sphi 0, %s189
    %s204 = sphi 0, %s190
    %s208 = sphi 0, %s208
    %s210 = sphi 0, %s208
    %s211 = sphi 0, %s210
    %s225 = sphi 0, %s211
    %s231 = sphi 0, %s233
    %s234 = sphi 0, %s231
    %s235 = sphi 0, %s234
    %s251 = sphi 0, %s235
  $region4: #{tpu_custom_call.1} parent=0 // loop_header_branch
    %18 = sbr.rel (%p16) target = $region8
  $region5: #{tpu_custom_call.1} parent=0 // loop_body
    %s20 = ssub.s32 %s15, 1
    %s21 = ssub.s32 %s15, 2
    %s28 = sadd.s32 1, %s23
    %p29 = scmp.ge.s32.totalorder %s28, 1
    %s30 = scalar_select %p29, 0, %s28
    %s31 = sadd.s32 1, %s22
    %s32 = scalar_select %p29, %s31, %s22
    %p33 = scmp.ge.s32.totalorder %s32, 3
    %s34 = scalar_select %p33, 0, %s32
    %s35 = ssub.s32 %s23, %s30
    %p36 = scmp.eq.s32.totalorder %s35, 0
    %s38 = sadd.s32 %s37, 1
    %s39 = scalar_select %p36, %s37, %s38
    %p42 = pneg %p36
    %p43 = scmp.eq.s32.totalorder %s15, 2
    %p44 = por %p42, %p43
    %p45 = scmp.ne.s32.totalorder %s37, %s40
    %p46 = scmp.eq.s32.totalorder %s15, 0
    %p47 = por %p45, %p46
    %p48 = scmp.ne.s32.totalorder %s37, %s40
    %p49 = scmp.eq.s32.totalorder %s20, 2
    %p50 = por %p48, %p49
    %p51 = scmp.ne.s32.totalorder %s40, %s41
    %p52 = scmp.eq.s32.totalorder %s20, 0
    %p53 = por %p51, %p52
    %p54 = scmp.ne.s32.totalorder %s40, %s41
    %p55 = scmp.eq.s32.totalorder %s21, 2
    %p56 = por %p54, %p55
    %p58 = scmp.ne.s32.totalorder %s41, %s57
    %p59 = scmp.eq.s32.totalorder %s21, 0
    %p60 = por %p58, %p59
    %s62 = sadd.s32 %s61, 1
    %p65 = scmp.eq.s32.totalorder %s15, 2
    %p66 = scmp.ne.s32.totalorder %s61, %s63
    %p67 = scmp.eq.s32.totalorder %s15, 0
    %p68 = por %p66, %p67
    %p69 = scmp.ne.s32.totalorder %s61, %s63
    %p70 = scmp.eq.s32.totalorder %s20, 2
    %p71 = por %p69, %p70
    %p72 = scmp.ne.s32.totalorder %s63, %s64
    %p73 = scmp.eq.s32.totalorder %s20, 0
    %p74 = por %p72, %p73
    %p75 = scmp.ne.s32.totalorder %s63, %s64
    %p76 = scmp.eq.s32.totalorder %s21, 2
    %p77 = por %p75, %p76
    %p79 = scmp.ne.s32.totalorder %s64, %s78
    %p80 = scmp.eq.s32.totalorder %s21, 0
    %p81 = por %p79, %p80
    %s83 = sadd.s32 %s82, 1
    %p86 = scmp.eq.s32.totalorder %s15, 2
    %p87 = scmp.ne.s32.totalorder %s82, %s84
    %p88 = scmp.eq.s32.totalorder %s15, 0
    %p89 = por %p87, %p88
    %p90 = scmp.ne.s32.totalorder %s82, %s84
    %p91 = scmp.eq.s32.totalorder %s20, 2
    %p92 = por %p90, %p91
    %p93 = scmp.ne.s32.totalorder %s84, %s85
    %p94 = scmp.eq.s32.totalorder %s20, 0
    %p95 = por %p93, %p94
    %p96 = scmp.ne.s32.totalorder %s84, %s85
    %p97 = scmp.eq.s32.totalorder %s21, 2
    %p98 = por %p96, %p97
    %p100 = scmp.ne.s32.totalorder %s85, %s99
    %p101 = scmp.eq.s32.totalorder %s21, 0
    %p102 = por %p100, %p101
    %s104 = sadd.s32 %s103, 1
    %p107 = scmp.eq.s32.totalorder %s15, 2
    %p108 = scmp.ne.s32.totalorder %s103, %s105
    %p109 = scmp.eq.s32.totalorder %s15, 0
    %p110 = por %p108, %p109
    %p111 = scmp.ne.s32.totalorder %s103, %s105
    %p112 = scmp.eq.s32.totalorder %s20, 2
    %p113 = por %p111, %p112
    %p114 = scmp.ne.s32.totalorder %s105, %s106
    %p115 = scmp.eq.s32.totalorder %s20, 0
    %p116 = por %p114, %p115
    %p117 = scmp.ne.s32.totalorder %s105, %s106
    %p118 = scmp.eq.s32.totalorder %s21, 2
    %p119 = por %p117, %p118
    %p121 = scmp.ne.s32.totalorder %s106, %s120
    %p122 = scmp.eq.s32.totalorder %s21, 0
    %p123 = por %p121, %p122
    %s125 = sadd.s32 %s124, 1
    %p128 = scmp.eq.s32.totalorder %s15, 2
    %p129 = scmp.ne.s32.totalorder %s124, %s126
    %p130 = scmp.eq.s32.totalorder %s15, 0
    %p131 = por %p129, %p130
    %p132 = scmp.ne.s32.totalorder %s124, %s126
    %p133 = scmp.eq.s32.totalorder %s20, 2
    %p134 = por %p132, %p133
    %p135 = scmp.ne.s32.totalorder %s126, %s127
    %p136 = scmp.eq.s32.totalorder %s20, 0
    %p137 = por %p135, %p136
    %p138 = scmp.ne.s32.totalorder %s126, %s127
    %p139 = scmp.eq.s32.totalorder %s21, 2
    %p140 = por %p138, %p139
    %p142 = scmp.ne.s32.totalorder %s127, %s141
    %p143 = scmp.eq.s32.totalorder %s21, 0
    %p144 = por %p142, %p143
    %s146 = sadd.s32 %s145, 1
    %p149 = scmp.eq.s32.totalorder %s15, 2
    %p150 = scmp.ne.s32.totalorder %s145, %s147
    %p151 = scmp.eq.s32.totalorder %s15, 0
    %p152 = por %p150, %p151
    %p153 = scmp.ne.s32.totalorder %s145, %s147
    %p154 = scmp.eq.s32.totalorder %s20, 2
    %p155 = por %p153, %p154
    %p156 = scmp.ne.s32.totalorder %s147, %s148
    %p157 = scmp.eq.s32.totalorder %s20, 0
    %p158 = por %p156, %p157
    %p159 = scmp.ne.s32.totalorder %s147, %s148
    %p160 = scmp.eq.s32.totalorder %s21, 2
    %p161 = por %p159, %p160
    %p163 = scmp.ne.s32.totalorder %s148, %s162
    %p164 = scmp.eq.s32.totalorder %s21, 0
    %p165 = por %p163, %p164
    %s167 = sadd.s32 %s166, 1
    %p170 = scmp.eq.s32.totalorder %s15, 2
    %p171 = scmp.ne.s32.totalorder %s166, %s168
    %p172 = scmp.eq.s32.totalorder %s15, 0
    %p173 = por %p171, %p172
    %p174 = scmp.ne.s32.totalorder %s166, %s168
    %p175 = scmp.eq.s32.totalorder %s20, 2
    %p176 = por %p174, %p175
    %p177 = scmp.ne.s32.totalorder %s168, %s169
    %p178 = scmp.eq.s32.totalorder %s20, 0
    %p179 = por %p177, %p178
    %p180 = scmp.ne.s32.totalorder %s168, %s169
    %p181 = scmp.eq.s32.totalorder %s21, 2
    %p182 = por %p180, %p181
    %p184 = scmp.ne.s32.totalorder %s169, %s183
    %p185 = scmp.eq.s32.totalorder %s21, 0
    %p186 = por %p184, %p185
    %s188 = sadd.s32 %s187, 1
    %p191 = scmp.eq.s32.totalorder %s15, 2
    %p192 = scmp.ne.s32.totalorder %s187, %s189
    %p193 = scmp.eq.s32.totalorder %s15, 0
    %p194 = por %p192, %p193
    %p195 = scmp.ne.s32.totalorder %s187, %s189
    %p196 = scmp.eq.s32.totalorder %s20, 2
    %p197 = por %p195, %p196
    %p198 = scmp.ne.s32.totalorder %s189, %s190
    %p199 = scmp.eq.s32.totalorder %s20, 0
    %p200 = por %p198, %p199
    %p201 = scmp.ne.s32.totalorder %s189, %s190
    %p202 = scmp.eq.s32.totalorder %s21, 2
    %p203 = por %p201, %p202
    %p205 = scmp.ne.s32.totalorder %s190, %s204
    %p206 = scmp.eq.s32.totalorder %s21, 0
    %p207 = por %p205, %p206
    %s209 = sadd.s32 %s208, 1
    %p212 = scmp.eq.s32.totalorder %s15, 2
    %p213 = scmp.ne.s32.totalorder %s208, %s210
    %p214 = scmp.eq.s32.totalorder %s15, 0
    %p215 = por %p213, %p214
    %p216 = scmp.ne.s32.totalorder %s208, %s210
    %p217 = scmp.eq.s32.totalorder %s20, 2
    %p218 = por %p216, %p217
    %p219 = scmp.ne.s32.totalorder %s210, %s211
    %p220 = scmp.eq.s32.totalorder %s20, 0
    %p221 = por %p219, %p220
    %p222 = scmp.ne.s32.totalorder %s210, %s211
    %p223 = scmp.eq.s32.totalorder %s21, 2
    %p224 = por %p222, %p223
    %p226 = scmp.ne.s32.totalorder %s211, %s225
    %p227 = scmp.eq.s32.totalorder %s21, 0
    %p228 = por %p226, %p227
    %s229 = ssub.s32 %s23, %s30
    %p230 = scmp.eq.s32.totalorder %s229, 0
    %s232 = sadd.s32 %s231, 1
    %s233 = scalar_select %p230, %s231, %s232
    %p236 = pneg %p230
    %p237 = scmp.eq.s32.totalorder %s15, 2
    %p238 = por %p236, %p237
    %p239 = scmp.ne.s32.totalorder %s231, %s234
    %p240 = scmp.eq.s32.totalorder %s15, 0
    %p241 = por %p239, %p240
    %p242 = scmp.ne.s32.totalorder %s231, %s234
    %p243 = scmp.eq.s32.totalorder %s20, 2
    %p244 = por %p242, %p243
    %p245 = scmp.ne.s32.totalorder %s234, %s235
    %p246 = scmp.eq.s32.totalorder %s20, 0
    %p247 = por %p245, %p246
    %p248 = scmp.ne.s32.totalorder %s234, %s235
    %p249 = scmp.eq.s32.totalorder %s21, 2
    %p250 = por %p248, %p249
    %p252 = scmp.ne.s32.totalorder %s235, %s251
    %p253 = scmp.eq.s32.totalorder %s21, 0
    %p254 = por %p252, %p253
    %p255 = scmp.le.s32.totalorder 1, %s15
    %p256 = scmp.lt.s32.totalorder %s15, 4
    %p257 = pnand %p255, %p256
    %p258 = pneg %p257
    // Predicated region
    $region9: #{tpu_custom_call.1} parent=5 // pred_check
      _
    $region10: #{tpu_custom_call.1} parent=5 // pred_check_branch
      %260 = sbr.rel (%p257) target = $region12
    $region11: #{tpu_custom_call.1} parent=5 // pred_region
      %s261 = ssub.s32 %s15, 1
      // Predicated region
      $region13: #{tpu_custom_call.1} parent=11 // pred_check
        %p262 = pneg %p53
      $region14: #{tpu_custom_call.1} parent=11 // pred_check_branch
        %264 = sbr.rel (%p262) target = $region16
      $region15: #{tpu_custom_call.1} parent=11 // pred_region
        %p265 = scmp.lt.s32.totalorder %s25, 0
        %s266 = scalar_select %p265, %s25, 0
        %s267 = smul.addr %s266, 8
        %s268 = scalar_lea.vmem %s0, %s267
      $region16: #{tpu_custom_call.1} parent=11 // pred_fallthru
        _
      // Predicated region
      $region17: #{tpu_custom_call.1} parent=11 // pred_check
        %p269 = pneg %p74
      $region18: #{tpu_custom_call.1} parent=11 // pred_check_branch
        %271 = sbr.rel (%p269) target = $region20
      $region19: #{tpu_custom_call.1} parent=11 // pred_region
        _
      $region20: #{tpu_custom_call.1} parent=11 // pred_fallthru
        _
      // Predicated region
      $region21: #{tpu_custom_call.1} parent=11 // pred_check
        %p272 = pneg %p95
      $region22: #{tpu_custom_call.1} parent=11 // pred_check_branch
        %274 = sbr.rel (%p272) target = $region24
      $region23: #{tpu_custom_call.1} parent=11 // pred_region
        _
      $region24: #{tpu_custom_call.1} parent=11 // pred_fallthru
        _
      // Predicated region
      $region25: #{tpu_custom_call.1} parent=11 // pred_check
        %p275 = pneg %p116
      $region26: #{tpu_custom_call.1} parent=11 // pred_check_branch
        %277 = sbr.rel (%p275) target = $region28
      $region27: #{tpu_custom_call.1} parent=11 // pred_region
        _
      $region28: #{tpu_custom_call.1} parent=11 // pred_fallthru
        _
      // Predicated region
      $region29: #{tpu_custom_call.1} parent=11 // pred_check
        %p278 = pneg %p137
      $region30: #{tpu_custom_call.1} parent=11 // pred_check_branch
        %280 = sbr.rel (%p278) target = $region32
      $region31: #{tpu_custom_call.1} parent=11 // pred_region
        _
      $region32: #{tpu_custom_call.1} parent=11 // pred_fallthru
        _
      // Predicated region
      $region33: #{tpu_custom_call.1} parent=11 // pred_check
        %p281 = pneg %p158
      $region34: #{tpu_custom_call.1} parent=11 // pred_check_branch
        %283 = sbr.rel (%p281) target = $region36
      $region35: #{tpu_custom_call.1} parent=11 // pred_region
        _
      $region36: #{tpu_custom_call.1} parent=11 // pred_fallthru
        _
      // Predicated region
      $region37: #{tpu_custom_call.1} parent=11 // pred_check
        %p284 = pneg %p179
      $region38: #{tpu_custom_call.1} parent=11 // pred_check_branch
        %286 = sbr.rel (%p284) target = $region40
      $region39: #{tpu_custom_call.1} parent=11 // pred_region
        _
      $region40: #{tpu_custom_call.1} parent=11 // pred_fallthru
        _
      // Predicated region
      $region41: #{tpu_custom_call.1} parent=11 // pred_check
        %p287 = pneg %p200
      $region42: #{tpu_custom_call.1} parent=11 // pred_check_branch
        %289 = sbr.rel (%p287) target = $region44
      $region43: #{tpu_custom_call.1} parent=11 // pred_region
        _
      $region44: #{tpu_custom_call.1} parent=11 // pred_fallthru
        _
      // Predicated region
      $region45: #{tpu_custom_call.1} parent=11 // pred_check
        %p290 = pneg %p221
      $region46: #{tpu_custom_call.1} parent=11 // pred_check_branch
        %292 = sbr.rel (%p290) target = $region48
      $region47: #{tpu_custom_call.1} parent=11 // pred_region
        _
      $region48: #{tpu_custom_call.1} parent=11 // pred_fallthru
        _
    $region12: #{tpu_custom_call.1} parent=5 // pred_fallthru
      _
    %p293 = scmp.lt.s32.totalorder %s15, 3
    // Predicated region
    $region49: #{tpu_custom_call.1} parent=5 // pred_check
      %p294 = pneg %p293
    $region50: #{tpu_custom_call.1} parent=5 // pred_check_branch
      %296 = sbr.rel (%p294) target = $region52
    $region51: #{tpu_custom_call.1} parent=5 // pred_region
      _
    $region52: #{tpu_custom_call.1} parent=5 // pred_fallthru
      _
    %p297 = scmp.le.s32.totalorder 1, %s15
    %p298 = scmp.lt.s32.totalorder %s15, 4
    %p299 = pnand %p297, %p298
    %p300 = pneg %p299
    // Predicated region
    $region53: #{tpu_custom_call.1} parent=5 // pred_check
      _
    $region54: #{tpu_custom_call.1} parent=5 // pred_check_branch
      %302 = sbr.rel (%p299) target = $region56
    $region55: #{tpu_custom_call.1} parent=5 // pred_region
      %s303 = ssub.s32 %s15, 1
      %p304 = scmp.lt.s32.totalorder %s25, 0
      %s305 = scalar_select %p304, %s25, 0
      %s306 = smul.addr %s305, 8
      %s307 = scalar_lea.vmem %s0, %s306
      %p308 = pneg %p53
      %p309 = pneg %p50
      %p310 = pneg %p74
      %p311 = pneg %p71
      %p312 = pneg %p95
      %p313 = pneg %p92
      %p314 = pneg %p116
      %p315 = pneg %p113
      %p316 = pneg %p137
      %p317 = pneg %p134
      %p318 = pneg %p158
      %p319 = pneg %p155
      %p320 = pneg %p179
      %p321 = pneg %p176
      %p322 = pneg %p200
      %p323 = pneg %p197
      %p324 = pneg %p221
      %p325 = pneg %p218
      %p326 = pneg %p247
      %p327 = pneg %p244
      %p328 = scmp.lt.s32.totalorder %s25, 0
      %s329 = scalar_select %p328, %s25, 0
      %s330 = smul.addr %s329, 8
      %s331 = scalar_lea.vmem %s9, %s330
      %p332 = scmp.lt.s32.totalorder %s25, 0
      %s333 = scalar_select %p332, %s25, 0
      %s334 = smul.addr %s333, 8
      %s335 = scalar_lea.vmem %s0, %s334
      %p336 = scmp.lt.s32.totalorder %s25, 0
      %s337 = scalar_select %p336, %s25, 0
      %s338 = smul.addr %s337, 8
      %s339 = scalar_lea.vmem %s9, %s338
      %p340 = scmp.eq.s32.totalorder %s24, 0
      %p341 = scmp.eq.s32.totalorder %s25, 0
      %p342 = pnand %p340, %p341
      %p343 = pneg %p342
      // Predicated region
      $region57: #{tpu_custom_call.1} parent=55 // pred_check
        _
      $region58: #{tpu_custom_call.1} parent=55 // pred_check_branch
        %345 = sbr.rel (%p342) target = $region60
      $region59: #{tpu_custom_call.1} parent=55 // pred_region
        %346 = vst [vmem:[#allocation2] sm:$0x1] 0.0
        %347 = vst [vmem:[#allocation3] sm:$0x1] 0.0
        %vm348 = vcmask 516096
        %349 = vst.msk [vmem:[#allocation4] sm:$0x1] %vm348, 0.0
        %350 = vst.msk [vmem:[#allocation5] sm:$0x1] %vm348, 0.0
      $region60: #{tpu_custom_call.1} parent=55 // pred_fallthru
        _
      %p351 = scmp.eq.s32.totalorder %s24, 1
      %p352 = pnand %p351, %p341
      %p353 = pneg %p352
      // Predicated region
      $region61: #{tpu_custom_call.1} parent=55 // pred_check
        _
      $region62: #{tpu_custom_call.1} parent=55 // pred_check_branch
        %355 = sbr.rel (%p352) target = $region64
      $region63: #{tpu_custom_call.1} parent=55 // pred_region
        %v356 = vld [vmem:[#allocation2] sm:$0x1]
        %v357 = vmul.f32 %v356, 0.125
        %v358 = vld [vmem:[#allocation3] sm:$0x1]
        %v359 = vmul.f32 %v358, 0.125
        %v360 = vmul.f32 %v357, %v357
        %v361 = vsub.f32 %v359, %v360
        %v362 = vmax.f32 %v361, 0.0
        %363 = vst [vmem:[#allocation2] sm:$0x1] %v357
        %v364 = vadd.f32 %v362, 1e-05
        %v365 = vrsqrt.pop %v364
        %366 = vst [vmem:[#allocation3] sm:$0x1] %v365
      $region64: #{tpu_custom_call.1} parent=55 // pred_fallthru
        _
      %p367 = scmp.eq.s32.totalorder %s24, 2
      %p368 = pnand %p367, %p341
      %p369 = pneg %p368
      // Predicated region
      $region65: #{tpu_custom_call.1} parent=55 // pred_check
        _
      $region66: #{tpu_custom_call.1} parent=55 // pred_check_branch
        %371 = sbr.rel (%p368) target = $region68
      $region67: #{tpu_custom_call.1} parent=55 // pred_region
        %v372 = vld [vmem:[#allocation4] sm:$0x1]
        %v373 = vmul.f32 %v372, 0.125
        %v374 = vld [vmem:[#allocation5] sm:$0x1]
        %v375 = vmul.f32 %v374, 0.125
        %v376 = vmul.f32 %v373, %v373
        %v377 = vsub.f32 %v375, %v376
        %v378 = vmax.f32 %v377, 0.0
        %vm379 = vcmask 516096
        %380 = vst.msk [vmem:[#allocation4] sm:$0x1] %vm379, %v373
        %v381 = vadd.f32 %v378, 1e-05
        %v382 = vrsqrt.pop %v381
        %383 = vst.msk [vmem:[#allocation5] sm:$0x1] %vm379, %v382
      $region68: #{tpu_custom_call.1} parent=55 // pred_fallthru
        _
      %v384 = vld [vmem:[%s335] sm:$0xff]
      // Predicated region
      $region69: #{tpu_custom_call.1} parent=55 // pred_check
        %p385 = pneg %p340
      $region70: #{tpu_custom_call.1} parent=55 // pred_check_branch
        %387 = sbr.rel (%p385) target = $region72
      $region71: #{tpu_custom_call.1} parent=55 // pred_region
        %v388 = vld [vmem:[%s1] sm:$0xff]
        %v389 = vld [vmem:[%s1 + $0x8] sm:$0xff]
        %v390 = vld [vmem:[%s1 + $0x10] sm:$0xff]
        %v391 = vld [vmem:[%s1 + $0x18] sm:$0xff]
        %v392 = vld [vmem:[%s2] sm:$0x1]
        %v394 = vlaneseq
        %v395 = vshrl.u32 %v394, 7
        %v396 = vsub.s32 0, %v395
        %v397 = vrot.slane %v392, %v396
        %vm399 = vcmask 261120
        %v401 = vsel %vm399, %v384, 0
        %403 = vmatprep.subr.mxu0 0.0
        %404 = vmatpush1.msra.mxu0 0.0
        %405 = vmatprep.subr.mxu0 0.0
        %406 = vmatpush1.msra.mxu0 0.0
        %407 = vmatprep.subr.mxu0 0.0
        %408 = vmatpush1.msra.mxu0 0.0
        %409 = vmatprep.subr.mxu0 0.0
        %410 = vmatpush1.msra.mxu0 0.0
        %411 = vmatprep.subr.mxu0 0.0
        %412 = vmatpush1.msra.mxu0 0.0
        %413 = vmatprep.subr.mxu0 0.0
        %414 = vmatpush1.msra.mxu0 0.0
        %415 = vmatprep.subr.mxu0 0.0
        %416 = vmatpush1.msra.mxu0 0.0
        %417 = vmatprep.subr.mxu0 0.0
        %418 = vmatpush1.msra.mxu0 0.0
        %419 = vmatprep.subr.mxu0 0.0
        %420 = vmatpush1.msra.mxu0 0.0
        %421 = vmatprep.subr.mxu0 0.0
        %422 = vmatpush1.msra.mxu0 0.0
        %423 = vmatprep.subr.mxu0 0.0
        %424 = vmatpush1.msra.mxu0 0.0
        %425 = vmatprep.subr.mxu0 0.0
        %426 = vmatpush1.msra.mxu0 0.0
        %427 = vmatprep.subr.mxu0 0.0
        %428 = vmatpush1.msra.mxu0 %v391
        %429 = vmatprep.subr.mxu0 0.0
        %430 = vmatpush1.msra.mxu0 %v390
        %431 = vmatprep.subr.mxu0 0.0
        %432 = vmatpush1.msra.mxu0 %v389
        %433 = vmatprep.subr.mxu0 0.0
        %434 = vmatpush1.msra.mxu0 %v388
        %435 = vmatprep.subr.mxu0 0.0
        %436 = vmatpush2.msra.mxu0 0.0
        %437 = vmatprep.subr.mxu0 0.0
        %438 = vmatpush2.msra.mxu0 0.0
        %439 = vmatprep.subr.mxu0 0.0
        %440 = vmatpush2.msra.mxu0 0.0
        %441 = vmatprep.subr.mxu0 0.0
        %442 = vmatpush2.msra.mxu0 0.0
        %443 = vmatprep.subr.mxu0 0.0
        %444 = vmatpush2.msra.mxu0 0.0
        %445 = vmatprep.subr.mxu0 0.0
        %446 = vmatpush2.msra.mxu0 0.0
        %447 = vmatprep.subr.mxu0 0.0
        %448 = vmatpush2.msra.mxu0 0.0
        %449 = vmatprep.subr.mxu0 0.0
        %450 = vmatpush2.msra.mxu0 0.0
        %451 = vmatprep.subr.mxu0 0.0
        %452 = vmatpush2.msra.mxu0 0.0
        %453 = vmatprep.subr.mxu0 0.0
        %454 = vmatpush2.msra.mxu0 0.0
        %455 = vmatprep.subr.mxu0 0.0
        %456 = vmatpush2.msra.mxu0 0.0
        %457 = vmatprep.subr.mxu0 0.0
        %458 = vmatpush2.msra.mxu0 0.0
        %459 = vmatprep.subr.mxu0 0.0
        %460 = vmatpush2.msra.mxu0 0.0
        %461 = vmatprep.subr.mxu0 0.0
        %462 = vmatpush2.msra.mxu0 0.0
        %463 = vmatprep.subr.mxu0 0.0
        %464 = vmatpush2.msra.mxu0 0.0
        %465 = vmatprep.subr.mxu0 0.0
        %466 = vmatpush2.msra.mxu0 0.0
        %467 = vmatprep.mubr.f32.mxu0 0.0
        %468 = vmatmul.mubr.f32.gmra.mxu0 %v401
        %v469 = vpop.f32.mrf.mxu0
        %v470 = vadd.f32 %v397, %v469
        %v471 = vpop.f32.mrf.mxu0
        %472 = vdwg.mxu0
        %v473 = vmax.f32 %v470, 0.0
        %v474 = vld [vmem:[#allocation2] sm:$0x1]
        %v475 = vrot.slane %v473, 4
        %v476 = vadd.f32 %v473, %v475
        %v477 = vrot.slane %v476, 2
        %v478 = vadd.f32 %v476, %v477
        %v479 = vrot.slane %v478, 1
        %v480 = vadd.f32 %v478, %v479
        %v481 = vadd.f32 %v474, %v480
        %482 = vst [vmem:[#allocation2] sm:$0x1] %v481
        %v483 = vld [vmem:[#allocation3] sm:$0x1]
        %v484 = vmul.f32 %v473, %v473
        %v485 = vrot.slane %v484, 4
        %v486 = vadd.f32 %v484, %v485
        %v487 = vrot.slane %v486, 2
        %v488 = vadd.f32 %v486, %v487
        %v489 = vrot.slane %v488, 1
        %v490 = vadd.f32 %v488, %v489
        %v491 = vadd.f32 %v483, %v490
        %492 = vst [vmem:[#allocation3] sm:$0x1] %v491
      $region72: #{tpu_custom_call.1} parent=55 // pred_fallthru
        _
      // Predicated region
      $region73: #{tpu_custom_call.1} parent=55 // pred_check
        %p493 = pneg %p351
      $region74: #{tpu_custom_call.1} parent=55 // pred_check_branch
        %495 = sbr.rel (%p493) target = $region76
      $region75: #{tpu_custom_call.1} parent=55 // pred_region
        %v496 = vld [vmem:[%s1] sm:$0xff]
        %v497 = vld [vmem:[%s1 + $0x8] sm:$0xff]
        %v498 = vld [vmem:[%s1 + $0x10] sm:$0xff]
        %v499 = vld [vmem:[%s1 + $0x18] sm:$0xff]
        %v500 = vld [vmem:[%s2] sm:$0x1]
        %v502 = vlaneseq
        %v503 = vshrl.u32 %v502, 7
        %v504 = vsub.s32 0, %v503
        %v505 = vrot.slane %v500, %v504
        %vm507 = vcmask 261120
        %v509 = vsel %vm507, %v384, 0
        %511 = vmatprep.subr.mxu0 0.0
        %512 = vmatpush1.msra.mxu0 0.0
        %513 = vmatprep.subr.mxu0 0.0
        %514 = vmatpush1.msra.mxu0 0.0
        %515 = vmatprep.subr.mxu0 0.0
        %516 = vmatpush1.msra.mxu0 0.0
        %517 = vmatprep.subr.mxu0 0.0
        %518 = vmatpush1.msra.mxu0 0.0
        %519 = vmatprep.subr.mxu0 0.0
        %520 = vmatpush1.msra.mxu0 0.0
        %521 = vmatprep.subr.mxu0 0.0
        %522 = vmatpush1.msra.mxu0 0.0
        %523 = vmatprep.subr.mxu0 0.0
        %524 = vmatpush1.msra.mxu0 0.0
        %525 = vmatprep.subr.mxu0 0.0
        %526 = vmatpush1.msra.mxu0 0.0
        %527 = vmatprep.subr.mxu0 0.0
        %528 = vmatpush1.msra.mxu0 0.0
        %529 = vmatprep.subr.mxu0 0.0
        %530 = vmatpush1.msra.mxu0 0.0
        %531 = vmatprep.subr.mxu0 0.0
        %532 = vmatpush1.msra.mxu0 0.0
        %533 = vmatprep.subr.mxu0 0.0
        %534 = vmatpush1.msra.mxu0 0.0
        %535 = vmatprep.subr.mxu0 0.0
        %536 = vmatpush1.msra.mxu0 %v499
        %537 = vmatprep.subr.mxu0 0.0
        %538 = vmatpush1.msra.mxu0 %v498
        %539 = vmatprep.subr.mxu0 0.0
        %540 = vmatpush1.msra.mxu0 %v497
        %541 = vmatprep.subr.mxu0 0.0
        %542 = vmatpush1.msra.mxu0 %v496
        %543 = vmatprep.subr.mxu0 0.0
        %544 = vmatpush2.msra.mxu0 0.0
        %545 = vmatprep.subr.mxu0 0.0
        %546 = vmatpush2.msra.mxu0 0.0
        %547 = vmatprep.subr.mxu0 0.0
        %548 = vmatpush2.msra.mxu0 0.0
        %549 = vmatprep.subr.mxu0 0.0
        %550 = vmatpush2.msra.mxu0 0.0
        %551 = vmatprep.subr.mxu0 0.0
        %552 = vmatpush2.msra.mxu0 0.0
        %553 = vmatprep.subr.mxu0 0.0
        %554 = vmatpush2.msra.mxu0 0.0
        %555 = vmatprep.subr.mxu0 0.0
        %556 = vmatpush2.msra.mxu0 0.0
        %557 = vmatprep.subr.mxu0 0.0
        %558 = vmatpush2.msra.mxu0 0.0
        %559 = vmatprep.subr.mxu0 0.0
        %560 = vmatpush2.msra.mxu0 0.0
        %561 = vmatprep.subr.mxu0 0.0
        %562 = vmatpush2.msra.mxu0 0.0
        %563 = vmatprep.subr.mxu0 0.0
        %564 = vmatpush2.msra.mxu0 0.0
        %565 = vmatprep.subr.mxu0 0.0
        %566 = vmatpush2.msra.mxu0 0.0
        %567 = vmatprep.subr.mxu0 0.0
        %568 = vmatpush2.msra.mxu0 0.0
        %569 = vmatprep.subr.mxu0 0.0
        %570 = vmatpush2.msra.mxu0 0.0
        %571 = vmatprep.subr.mxu0 0.0
        %572 = vmatpush2.msra.mxu0 0.0
        %573 = vmatprep.subr.mxu0 0.0
        %574 = vmatpush2.msra.mxu0 0.0
        %575 = vmatprep.mubr.f32.mxu0 0.0
        %576 = vmatmul.mubr.f32.gmra.mxu0 %v509
        %v577 = vpop.f32.mrf.mxu0
        %v578 = vadd.f32 %v505, %v577
        %v579 = vpop.f32.mrf.mxu0
        %580 = vdwg.mxu0
        %v581 = vmax.f32 %v578, 0.0
        %v582 = vld [vmem:[#allocation2] sm:$0x1]
        %v584 = vlaneseq
        %v585 = vshrl.u32 %v584, 7
        %v586 = vsub.s32 0, %v585
        %v587 = vrot.slane %v582, %v586
        %v589 = vsub.f32 %v581, %v587
        %v590 = vld [vmem:[#allocation3] sm:$0x1]
        %v592 = vlaneseq
        %v593 = vshrl.u32 %v592, 7
        %v594 = vsub.s32 0, %v593
        %v595 = vrot.slane %v590, %v594
        %v597 = vmul.f32 %v589, %v595
        %v598 = vld [vmem:[%s3] sm:$0xff]
        %v599 = vld [vmem:[%s3 + $0x8] sm:$0xff]
        %v600 = vld [vmem:[%s3 + $0x10] sm:$0xff]
        %v601 = vld [vmem:[%s3 + $0x18] sm:$0xff]
        %v602 = vld [vmem:[%s3 + $0x20] sm:$0xff]
        %v603 = vld [vmem:[%s3 + $0x28] sm:$0xff]
        %v604 = vld [vmem:[%s3 + $0x30] sm:$0xff]
        %v605 = vld [vmem:[%s3 + $0x38] sm:$0xff]
        %v606 = vld [vmem:[%s3 + $0x40] sm:$0xff]
        %v607 = vld [vmem:[%s3 + $0x48] sm:$0xff]
        %v608 = vld [vmem:[%s3 + $0x50] sm:$0xff]
        %v609 = vld [vmem:[%s3 + $0x58] sm:$0xff]
        %v610 = vld [vmem:[%s3 + $0x60] sm:$0xff]
        %v611 = vld [vmem:[%s3 + $0x68] sm:$0xff]
        %v612 = vld [vmem:[%s3 + $0x70] sm:$0xff]
        %v613 = vld [vmem:[%s3 + $0x78] sm:$0xff]
        %v614 = vld [vmem:[%s4] sm:$0x1]
        %v616 = vlaneseq
        %v617 = vshrl.u32 %v616, 7
        %v618 = vsub.s32 0, %v617
        %v619 = vrot.slane %v614, %v618
        %621 = vmatprep.subr.mxu0 0.0
        %622 = vmatpush1.msra.mxu0 %v613
        %623 = vmatprep.subr.mxu0 0.0
        %624 = vmatpush1.msra.mxu0 %v612
        %625 = vmatprep.subr.mxu0 0.0
        %626 = vmatpush1.msra.mxu0 %v611
        %627 = vmatprep.subr.mxu0 0.0
        %628 = vmatpush1.msra.mxu0 %v610
        %629 = vmatprep.subr.mxu0 0.0
        %630 = vmatpush1.msra.mxu0 %v609
        %631 = vmatprep.subr.mxu0 0.0
        %632 = vmatpush1.msra.mxu0 %v608
        %633 = vmatprep.subr.mxu0 0.0
        %634 = vmatpush1.msra.mxu0 %v607
        %635 = vmatprep.subr.mxu0 0.0
        %636 = vmatpush1.msra.mxu0 %v606
        %637 = vmatprep.subr.mxu0 0.0
        %638 = vmatpush1.msra.mxu0 %v605
        %639 = vmatprep.subr.mxu0 0.0
        %640 = vmatpush1.msra.mxu0 %v604
        %641 = vmatprep.subr.mxu0 0.0
        %642 = vmatpush1.msra.mxu0 %v603
        %643 = vmatprep.subr.mxu0 0.0
        %644 = vmatpush1.msra.mxu0 %v602
        %645 = vmatprep.subr.mxu0 0.0
        %646 = vmatpush1.msra.mxu0 %v601
        %647 = vmatprep.subr.mxu0 0.0
        %648 = vmatpush1.msra.mxu0 %v600
        %649 = vmatprep.subr.mxu0 0.0
        %650 = vmatpush1.msra.mxu0 %v599
        %651 = vmatprep.subr.mxu0 0.0
        %652 = vmatpush1.msra.mxu0 %v598
        %653 = vmatprep.subr.mxu0 0.0
        %654 = vmatpush2.msra.mxu0 0.0
        %655 = vmatprep.subr.mxu0 0.0
        %656 = vmatpush2.msra.mxu0 0.0
        %657 = vmatprep.subr.mxu0 0.0
        %658 = vmatpush2.msra.mxu0 0.0
        %659 = vmatprep.subr.mxu0 0.0
        %660 = vmatpush2.msra.mxu0 0.0
        %661 = vmatprep.subr.mxu0 0.0
        %662 = vmatpush2.msra.mxu0 0.0
        %663 = vmatprep.subr.mxu0 0.0
        %664 = vmatpush2.msra.mxu0 0.0
        %665 = vmatprep.subr.mxu0 0.0
        %666 = vmatpush2.msra.mxu0 0.0
        %667 = vmatprep.subr.mxu0 0.0
        %668 = vmatpush2.msra.mxu0 0.0
        %669 = vmatprep.subr.mxu0 0.0
        %670 = vmatpush2.msra.mxu0 0.0
        %671 = vmatprep.subr.mxu0 0.0
        %672 = vmatpush2.msra.mxu0 0.0
        %673 = vmatprep.subr.mxu0 0.0
        %674 = vmatpush2.msra.mxu0 0.0
        %675 = vmatprep.subr.mxu0 0.0
        %676 = vmatpush2.msra.mxu0 0.0
        %677 = vmatprep.subr.mxu0 0.0
        %678 = vmatpush2.msra.mxu0 0.0
        %679 = vmatprep.subr.mxu0 0.0
        %680 = vmatpush2.msra.mxu0 0.0
        %681 = vmatprep.subr.mxu0 0.0
        %682 = vmatpush2.msra.mxu0 0.0
        %683 = vmatprep.subr.mxu0 0.0
        %684 = vmatpush2.msra.mxu0 0.0
        %685 = vmatprep.mubr.f32.mxu0 0.0
        %686 = vmatmul.mubr.f32.gmra.mxu0 %v597
        %v687 = vpop.f32.mrf.mxu0
        %v688 = vadd.f32 %v619, %v687
        %v689 = vpop.f32.mrf.mxu0
        %690 = vdwg.mxu0
        %v691 = vmax.f32 %v688, 0.0
        %v692 = vld [vmem:[#allocation4] sm:$0x1]
        %vm693 = vcmask 523264
        %v694 = vsel %vm693, %v691, 0.0
        %v695 = vrot.slane %v694, 4
        %v696 = vadd.f32 %v694, %v695
        %v697 = vrot.slane %v696, 2
        %v698 = vadd.f32 %v696, %v697
        %v699 = vrot.slane %v698, 1
        %v700 = vadd.f32 %v698, %v699
        %v701 = vadd.f32 %v692, %v700
        %vm702 = vcmask 516096
        %703 = vst.msk [vmem:[#allocation4] sm:$0x1] %vm702, %v701
        %v704 = vld [vmem:[#allocation5] sm:$0x1]
        %v705 = vmul.f32 %v691, %v691
        %v706 = vsel %vm693, %v705, 0.0
        %v707 = vrot.slane %v706, 4
        %v708 = vadd.f32 %v706, %v707
        %v709 = vrot.slane %v708, 2
        %v710 = vadd.f32 %v708, %v709
        %v711 = vrot.slane %v710, 1
        %v712 = vadd.f32 %v710, %v711
        %v713 = vadd.f32 %v704, %v712
        %714 = vst.msk [vmem:[#allocation5] sm:$0x1] %vm702, %v713
      $region76: #{tpu_custom_call.1} parent=55 // pred_fallthru
        _
      // Predicated region
      $region77: #{tpu_custom_call.1} parent=55 // pred_check
        %p715 = pneg %p367
      $region78: #{tpu_custom_call.1} parent=55 // pred_check_branch
        %717 = sbr.rel (%p715) target = $region80
      $region79: #{tpu_custom_call.1} parent=55 // pred_region
        %v718 = vld [vmem:[%s1] sm:$0xff]
        %v719 = vld [vmem:[%s1 + $0x8] sm:$0xff]
        %v720 = vld [vmem:[%s1 + $0x10] sm:$0xff]
        %v721 = vld [vmem:[%s1 + $0x18] sm:$0xff]
        %v722 = vld [vmem:[%s2] sm:$0x1]
        %v724 = vlaneseq
        %v725 = vshrl.u32 %v724, 7
        %v726 = vsub.s32 0, %v725
        %v727 = vrot.slane %v722, %v726
        %vm729 = vcmask 261120
        %v731 = vsel %vm729, %v384, 0
        %733 = vmatprep.subr.mxu0 0.0
        %734 = vmatpush1.msra.mxu0 0.0
        %735 = vmatprep.subr.mxu0 0.0
        %736 = vmatpush1.msra.mxu0 0.0
        %737 = vmatprep.subr.mxu0 0.0
        %738 = vmatpush1.msra.mxu0 0.0
        %739 = vmatprep.subr.mxu0 0.0
        %740 = vmatpush1.msra.mxu0 0.0
        %741 = vmatprep.subr.mxu0 0.0
        %742 = vmatpush1.msra.mxu0 0.0
        %743 = vmatprep.subr.mxu0 0.0
        %744 = vmatpush1.msra.mxu0 0.0
        %745 = vmatprep.subr.mxu0 0.0
        %746 = vmatpush1.msra.mxu0 0.0
        %747 = vmatprep.subr.mxu0 0.0
        %748 = vmatpush1.msra.mxu0 0.0
        %749 = vmatprep.subr.mxu0 0.0
        %750 = vmatpush1.msra.mxu0 0.0
        %751 = vmatprep.subr.mxu0 0.0
        %752 = vmatpush1.msra.mxu0 0.0
        %753 = vmatprep.subr.mxu0 0.0
        %754 = vmatpush1.msra.mxu0 0.0
        %755 = vmatprep.subr.mxu0 0.0
        %756 = vmatpush1.msra.mxu0 0.0
        %757 = vmatprep.subr.mxu0 0.0
        %758 = vmatpush1.msra.mxu0 %v721
        %759 = vmatprep.subr.mxu0 0.0
        %760 = vmatpush1.msra.mxu0 %v720
        %761 = vmatprep.subr.mxu0 0.0
        %762 = vmatpush1.msra.mxu0 %v719
        %763 = vmatprep.subr.mxu0 0.0
        %764 = vmatpush1.msra.mxu0 %v718
        %765 = vmatprep.subr.mxu0 0.0
        %766 = vmatpush2.msra.mxu0 0.0
        %767 = vmatprep.subr.mxu0 0.0
        %768 = vmatpush2.msra.mxu0 0.0
        %769 = vmatprep.subr.mxu0 0.0
        %770 = vmatpush2.msra.mxu0 0.0
        %771 = vmatprep.subr.mxu0 0.0
        %772 = vmatpush2.msra.mxu0 0.0
        %773 = vmatprep.subr.mxu0 0.0
        %774 = vmatpush2.msra.mxu0 0.0
        %775 = vmatprep.subr.mxu0 0.0
        %776 = vmatpush2.msra.mxu0 0.0
        %777 = vmatprep.subr.mxu0 0.0
        %778 = vmatpush2.msra.mxu0 0.0
        %779 = vmatprep.subr.mxu0 0.0
        %780 = vmatpush2.msra.mxu0 0.0
        %781 = vmatprep.subr.mxu0 0.0
        %782 = vmatpush2.msra.mxu0 0.0
        %783 = vmatprep.subr.mxu0 0.0
        %784 = vmatpush2.msra.mxu0 0.0
        %785 = vmatprep.subr.mxu0 0.0
        %786 = vmatpush2.msra.mxu0 0.0
        %787 = vmatprep.subr.mxu0 0.0
        %788 = vmatpush2.msra.mxu0 0.0
        %789 = vmatprep.subr.mxu0 0.0
        %790 = vmatpush2.msra.mxu0 0.0
        %791 = vmatprep.subr.mxu0 0.0
        %792 = vmatpush2.msra.mxu0 0.0
        %793 = vmatprep.subr.mxu0 0.0
        %794 = vmatpush2.msra.mxu0 0.0
        %795 = vmatprep.subr.mxu0 0.0
        %796 = vmatpush2.msra.mxu0 0.0
        %797 = vmatprep.mubr.f32.mxu0 0.0
        %798 = vmatmul.mubr.f32.gmra.mxu0 %v731
        %v799 = vpop.f32.mrf.mxu0
        %v800 = vadd.f32 %v727, %v799
        %v801 = vpop.f32.mrf.mxu0
        %802 = vdwg.mxu0
        %v803 = vmax.f32 %v800, 0.0
        %v804 = vld [vmem:[#allocation2] sm:$0x1]
        %v806 = vlaneseq
        %v807 = vshrl.u32 %v806, 7
        %v808 = vsub.s32 0, %v807
        %v809 = vrot.slane %v804, %v808
        %v811 = vsub.f32 %v803, %v809
        %v812 = vld [vmem:[#allocation3] sm:$0x1]
        %v814 = vlaneseq
        %v815 = vshrl.u32 %v814, 7
        %v816 = vsub.s32 0, %v815
        %v817 = vrot.slane %v812, %v816
        %v819 = vmul.f32 %v811, %v817
        %v820 = vld [vmem:[%s3] sm:$0xff]
        %v821 = vld [vmem:[%s3 + $0x8] sm:$0xff]
        %v822 = vld [vmem:[%s3 + $0x10] sm:$0xff]
        %v823 = vld [vmem:[%s3 + $0x18] sm:$0xff]
        %v824 = vld [vmem:[%s3 + $0x20] sm:$0xff]
        %v825 = vld [vmem:[%s3 + $0x28] sm:$0xff]
        %v826 = vld [vmem:[%s3 + $0x30] sm:$0xff]
        %v827 = vld [vmem:[%s3 + $0x38] sm:$0xff]
        %v828 = vld [vmem:[%s3 + $0x40] sm:$0xff]
        %v829 = vld [vmem:[%s3 + $0x48] sm:$0xff]
        %v830 = vld [vmem:[%s3 + $0x50] sm:$0xff]
        %v831 = vld [vmem:[%s3 + $0x58] sm:$0xff]
        %v832 = vld [vmem:[%s3 + $0x60] sm:$0xff]
        %v833 = vld [vmem:[%s3 + $0x68] sm:$0xff]
        %v834 = vld [vmem:[%s3 + $0x70] sm:$0xff]
        %v835 = vld [vmem:[%s3 + $0x78] sm:$0xff]
        %v836 = vld [vmem:[%s4] sm:$0x1]
        %v838 = vlaneseq
        %v839 = vshrl.u32 %v838, 7
        %v840 = vsub.s32 0, %v839
        %v841 = vrot.slane %v836, %v840
        %843 = vmatprep.subr.mxu0 0.0
        %844 = vmatpush1.msra.mxu0 %v835
        %845 = vmatprep.subr.mxu0 0.0
        %846 = vmatpush1.msra.mxu0 %v834
        %847 = vmatprep.subr.mxu0 0.0
        %848 = vmatpush1.msra.mxu0 %v833
        %849 = vmatprep.subr.mxu0 0.0
        %850 = vmatpush1.msra.mxu0 %v832
        %851 = vmatprep.subr.mxu0 0.0
        %852 = vmatpush1.msra.mxu0 %v831
        %853 = vmatprep.subr.mxu0 0.0
        %854 = vmatpush1.msra.mxu0 %v830
        %855 = vmatprep.subr.mxu0 0.0
        %856 = vmatpush1.msra.mxu0 %v829
        %857 = vmatprep.subr.mxu0 0.0
        %858 = vmatpush1.msra.mxu0 %v828
        %859 = vmatprep.subr.mxu0 0.0
        %860 = vmatpush1.msra.mxu0 %v827
        %861 = vmatprep.subr.mxu0 0.0
        %862 = vmatpush1.msra.mxu0 %v826
        %863 = vmatprep.subr.mxu0 0.0
        %864 = vmatpush1.msra.mxu0 %v825
        %865 = vmatprep.subr.mxu0 0.0
        %866 = vmatpush1.msra.mxu0 %v824
        %867 = vmatprep.subr.mxu0 0.0
        %868 = vmatpush1.msra.mxu0 %v823
        %869 = vmatprep.subr.mxu0 0.0
        %870 = vmatpush1.msra.mxu0 %v822
        %871 = vmatprep.subr.mxu0 0.0
        %872 = vmatpush1.msra.mxu0 %v821
        %873 = vmatprep.subr.mxu0 0.0
        %874 = vmatpush1.msra.mxu0 %v820
        %875 = vmatprep.subr.mxu0 0.0
        %876 = vmatpush2.msra.mxu0 0.0
        %877 = vmatprep.subr.mxu0 0.0
        %878 = vmatpush2.msra.mxu0 0.0
        %879 = vmatprep.subr.mxu0 0.0
        %880 = vmatpush2.msra.mxu0 0.0
        %881 = vmatprep.subr.mxu0 0.0
        %882 = vmatpush2.msra.mxu0 0.0
        %883 = vmatprep.subr.mxu0 0.0
        %884 = vmatpush2.msra.mxu0 0.0
        %885 = vmatprep.subr.mxu0 0.0
        %886 = vmatpush2.msra.mxu0 0.0
        %887 = vmatprep.subr.mxu0 0.0
        %888 = vmatpush2.msra.mxu0 0.0
        %889 = vmatprep.subr.mxu0 0.0
        %890 = vmatpush2.msra.mxu0 0.0
        %891 = vmatprep.subr.mxu0 0.0
        %892 = vmatpush2.msra.mxu0 0.0
        %893 = vmatprep.subr.mxu0 0.0
        %894 = vmatpush2.msra.mxu0 0.0
        %895 = vmatprep.subr.mxu0 0.0
        %896 = vmatpush2.msra.mxu0 0.0
        %897 = vmatprep.subr.mxu0 0.0
        %898 = vmatpush2.msra.mxu0 0.0
        %899 = vmatprep.subr.mxu0 0.0
        %900 = vmatpush2.msra.mxu0 0.0
        %901 = vmatprep.subr.mxu0 0.0
        %902 = vmatpush2.msra.mxu0 0.0
        %903 = vmatprep.subr.mxu0 0.0
        %904 = vmatpush2.msra.mxu0 0.0
        %905 = vmatprep.subr.mxu0 0.0
        %906 = vmatpush2.msra.mxu0 0.0
        %907 = vmatprep.mubr.f32.mxu0 0.0
        %908 = vmatmul.mubr.f32.gmra.mxu0 %v819
        %v909 = vpop.f32.mrf.mxu0
        %v910 = vadd.f32 %v841, %v909
        %v911 = vpop.f32.mrf.mxu0
        %912 = vdwg.mxu0
        %v913 = vmax.f32 %v910, 0.0
        %v914 = vld [vmem:[#allocation4] sm:$0x1]
        %v916 = vlaneseq
        %v917 = vshrl.u32 %v916, 7
        %v918 = vsub.s32 0, %v917
        %v919 = vrot.slane %v914, %v918
        %v921 = vsub.f32 %v913, %v919
        %v922 = vld [vmem:[#allocation5] sm:$0x1]
        %v924 = vlaneseq
        %v925 = vshrl.u32 %v924, 7
        %v926 = vsub.s32 0, %v925
        %v927 = vrot.slane %v922, %v926
        %v929 = vmul.f32 %v921, %v927
        %v930 = vld [vmem:[%s5] sm:$0xff]
        %v931 = vld [vmem:[%s5 + $0x8] sm:$0xff]
        %v932 = vld [vmem:[%s5 + $0x10] sm:$0xff]
        %v933 = vld [vmem:[%s5 + $0x18] sm:$0xff]
        %v934 = vld [vmem:[%s5 + $0x20] sm:$0xff]
        %v935 = vld [vmem:[%s5 + $0x28] sm:$0xff]
        %v936 = vld [vmem:[%s5 + $0x30] sm:$0xff]
        %v937 = vld [vmem:[%s5 + $0x38] sm:$0xff]
        %v938 = vld [vmem:[%s6] sm:$0x1]
        %v940 = vlaneseq
        %v941 = vshrl.u32 %v940, 7
        %v942 = vsub.s32 0, %v941
        %v943 = vrot.slane %v938, %v942
        %vm945 = vcmask 523264
        %v947 = vsel %vm945, %v929, 0
        %949 = vmatprep.subr.mxu0 0.0
        %950 = vmatpush1.msra.mxu0 0.0
        %951 = vmatprep.subr.mxu0 0.0
        %952 = vmatpush1.msra.mxu0 0.0
        %953 = vmatprep.subr.mxu0 0.0
        %954 = vmatpush1.msra.mxu0 0.0
        %955 = vmatprep.subr.mxu0 0.0
        %956 = vmatpush1.msra.mxu0 0.0
        %957 = vmatprep.subr.mxu0 0.0
        %958 = vmatpush1.msra.mxu0 0.0
        %959 = vmatprep.subr.mxu0 0.0
        %960 = vmatpush1.msra.mxu0 0.0
        %961 = vmatprep.subr.mxu0 0.0
        %962 = vmatpush1.msra.mxu0 0.0
        %963 = vmatprep.subr.mxu0 0.0
        %964 = vmatpush1.msra.mxu0 0.0
        %965 = vmatprep.subr.mxu0 0.0
        %966 = vmatpush1.msra.mxu0 %v937
        %967 = vmatprep.subr.mxu0 0.0
        %968 = vmatpush1.msra.mxu0 %v936
        %969 = vmatprep.subr.mxu0 0.0
        %970 = vmatpush1.msra.mxu0 %v935
        %971 = vmatprep.subr.mxu0 0.0
        %972 = vmatpush1.msra.mxu0 %v934
        %973 = vmatprep.subr.mxu0 0.0
        %974 = vmatpush1.msra.mxu0 %v933
        %975 = vmatprep.subr.mxu0 0.0
        %976 = vmatpush1.msra.mxu0 %v932
        %977 = vmatprep.subr.mxu0 0.0
        %978 = vmatpush1.msra.mxu0 %v931
        %979 = vmatprep.subr.mxu0 0.0
        %980 = vmatpush1.msra.mxu0 %v930
        %981 = vmatprep.subr.mxu0 0.0
        %982 = vmatpush2.msra.mxu0 0.0
        %983 = vmatprep.subr.mxu0 0.0
        %984 = vmatpush2.msra.mxu0 0.0
        %985 = vmatprep.subr.mxu0 0.0
        %986 = vmatpush2.msra.mxu0 0.0
        %987 = vmatprep.subr.mxu0 0.0
        %988 = vmatpush2.msra.mxu0 0.0
        %989 = vmatprep.subr.mxu0 0.0
        %990 = vmatpush2.msra.mxu0 0.0
        %991 = vmatprep.subr.mxu0 0.0
        %992 = vmatpush2.msra.mxu0 0.0
        %993 = vmatprep.subr.mxu0 0.0
        %994 = vmatpush2.msra.mxu0 0.0
        %995 = vmatprep.subr.mxu0 0.0
        %996 = vmatpush2.msra.mxu0 0.0
        %997 = vmatprep.subr.mxu0 0.0
        %998 = vmatpush2.msra.mxu0 0.0
        %999 = vmatprep.subr.mxu0 0.0
        %1000 = vmatpush2.msra.mxu0 0.0
        %1001 = vmatprep.subr.mxu0 0.0
        %1002 = vmatpush2.msra.mxu0 0.0
        %1003 = vmatprep.subr.mxu0 0.0
        %1004 = vmatpush2.msra.mxu0 0.0
        %1005 = vmatprep.subr.mxu0 0.0
        %1006 = vmatpush2.msra.mxu0 0.0
        %1007 = vmatprep.subr.mxu0 0.0
        %1008 = vmatpush2.msra.mxu0 0.0
        %1009 = vmatprep.subr.mxu0 0.0
        %1010 = vmatpush2.msra.mxu0 0.0
        %1011 = vmatprep.subr.mxu0 0.0
        %1012 = vmatpush2.msra.mxu0 0.0
        %1013 = vmatprep.mubr.f32.mxu0 0.0
        %1014 = vmatmul.mubr.f32.gmra.mxu0 %v947
        %v1015 = vpop.f32.mrf.mxu0
        %v1016 = vadd.f32 %v943, %v1015
        %v1017 = vpop.f32.mrf.mxu0
        %1018 = vdwg.mxu0
        %v1019 = vmax.f32 %v1016, 0.0
        %v1020 = vld [vmem:[%s7] sm:$0xff]
        %v1021 = vld [vmem:[%s7 + $0x8] sm:$0xff]
        %v1022 = vld [vmem:[%s7 + $0x10] sm:$0xff]
        %v1023 = vld [vmem:[%s7 + $0x18] sm:$0xff]
        %v1024 = vld [vmem:[%s8] sm:$0x1]
        %v1026 = vlaneseq
        %v1027 = vshrl.u32 %v1026, 7
        %v1028 = vsub.s32 0, %v1027
        %v1029 = vrot.slane %v1024, %v1028
        %v1032 = vsel %vm729, %v1019, 0
        %1034 = vmatprep.subr.mxu0 0.0
        %1035 = vmatpush1.msra.mxu0 0.0
        %1036 = vmatprep.subr.mxu0 0.0
        %1037 = vmatpush1.msra.mxu0 0.0
        %1038 = vmatprep.subr.mxu0 0.0
        %1039 = vmatpush1.msra.mxu0 0.0
        %1040 = vmatprep.subr.mxu0 0.0
        %1041 = vmatpush1.msra.mxu0 0.0
        %1042 = vmatprep.subr.mxu0 0.0
        %1043 = vmatpush1.msra.mxu0 0.0
        %1044 = vmatprep.subr.mxu0 0.0
        %1045 = vmatpush1.msra.mxu0 0.0
        %1046 = vmatprep.subr.mxu0 0.0
        %1047 = vmatpush1.msra.mxu0 0.0
        %1048 = vmatprep.subr.mxu0 0.0
        %1049 = vmatpush1.msra.mxu0 0.0
        %1050 = vmatprep.subr.mxu0 0.0
        %1051 = vmatpush1.msra.mxu0 0.0
        %1052 = vmatprep.subr.mxu0 0.0
        %1053 = vmatpush1.msra.mxu0 0.0
        %1054 = vmatprep.subr.mxu0 0.0
        %1055 = vmatpush1.msra.mxu0 0.0
        %1056 = vmatprep.subr.mxu0 0.0
        %1057 = vmatpush1.msra.mxu0 0.0
        %1058 = vmatprep.subr.mxu0 0.0
        %1059 = vmatpush1.msra.mxu0 %v1023
        %1060 = vmatprep.subr.mxu0 0.0
        %1061 = vmatpush1.msra.mxu0 %v1022
        %1062 = vmatprep.subr.mxu0 0.0
        %1063 = vmatpush1.msra.mxu0 %v1021
        %1064 = vmatprep.subr.mxu0 0.0
        %1065 = vmatpush1.msra.mxu0 %v1020
        %1066 = vmatprep.subr.mxu0 0.0
        %1067 = vmatpush2.msra.mxu0 0.0
        %1068 = vmatprep.subr.mxu0 0.0
        %1069 = vmatpush2.msra.mxu0 0.0
        %1070 = vmatprep.subr.mxu0 0.0
        %1071 = vmatpush2.msra.mxu0 0.0
        %1072 = vmatprep.subr.mxu0 0.0
        %1073 = vmatpush2.msra.mxu0 0.0
        %1074 = vmatprep.subr.mxu0 0.0
        %1075 = vmatpush2.msra.mxu0 0.0
        %1076 = vmatprep.subr.mxu0 0.0
        %1077 = vmatpush2.msra.mxu0 0.0
        %1078 = vmatprep.subr.mxu0 0.0
        %1079 = vmatpush2.msra.mxu0 0.0
        %1080 = vmatprep.subr.mxu0 0.0
        %1081 = vmatpush2.msra.mxu0 0.0
        %1082 = vmatprep.subr.mxu0 0.0
        %1083 = vmatpush2.msra.mxu0 0.0
        %1084 = vmatprep.subr.mxu0 0.0
        %1085 = vmatpush2.msra.mxu0 0.0
        %1086 = vmatprep.subr.mxu0 0.0
        %1087 = vmatpush2.msra.mxu0 0.0
        %1088 = vmatprep.subr.mxu0 0.0
        %1089 = vmatpush2.msra.mxu0 0.0
        %1090 = vmatprep.subr.mxu0 0.0
        %1091 = vmatpush2.msra.mxu0 0.0
        %1092 = vmatprep.subr.mxu0 0.0
        %1093 = vmatpush2.msra.mxu0 0.0
        %1094 = vmatprep.subr.mxu0 0.0
        %1095 = vmatpush2.msra.mxu0 0.0
        %1096 = vmatprep.subr.mxu0 0.0
        %1097 = vmatpush2.msra.mxu0 0.0
        %1098 = vmatprep.mubr.f32.mxu0 0.0
        %1099 = vmatmul.mubr.f32.gmra.mxu0 %v1032
        %v1100 = vpop.f32.mrf.mxu0
        %v1101 = vadd.f32 %v1029, %v1100
        %v1102 = vpop.f32.mrf.mxu0
        %1103 = vdwg.mxu0
        %vm1104 = vcmask 31744
        %1105 = vst.msk [vmem:[%s339] sm:$0xff] %vm1104, %v1101
      $region80: #{tpu_custom_call.1} parent=55 // pred_fallthru
        _
      %p1106 = scmp.lt.s32.totalorder %s25, 0
      %s1107 = scalar_select %p1106, %s25, 0
      %s1108 = smul.addr %s1107, 8
      %s1109 = scalar_lea.vmem %s9, %s1108
      // Predicated region
      $region81: #{tpu_custom_call.1} parent=55 // pred_check
        %p1110 = pneg %p244
      $region82: #{tpu_custom_call.1} parent=55 // pred_check_branch
        %1112 = sbr.rel (%p1110) target = $region84
      $region83: #{tpu_custom_call.1} parent=55 // pred_region
        _
      $region84: #{tpu_custom_call.1} parent=55 // pred_fallthru
        _
      // Predicated region
      $region85: #{tpu_custom_call.1} parent=55 // pred_check
        %p1113 = pneg %p244
      $region86: #{tpu_custom_call.1} parent=55 // pred_check_branch
        %1115 = sbr.rel (%p1113) target = $region88
      $region87: #{tpu_custom_call.1} parent=55 // pred_region
        %p1116 = scmp.lt.s32.totalorder %s25, 0
        %s1117 = scalar_select %p1116, %s25, 0
        %s1118 = smul.addr %s1117, 8
        %s1119 = scalar_lea.vmem %s9, %s1118
      $region88: #{tpu_custom_call.1} parent=55 // pred_fallthru
        _
    $region56: #{tpu_custom_call.1} parent=5 // pred_fallthru
      _
    %p1120 = scmp.le.s32.totalorder 2, %s15
    // Predicated region
    $region89: #{tpu_custom_call.1} parent=5 // pred_check
      %p1121 = pneg %p1120
    $region90: #{tpu_custom_call.1} parent=5 // pred_check_branch
      %1123 = sbr.rel (%p1121) target = $region92
    $region91: #{tpu_custom_call.1} parent=5 // pred_region
      %s1124 = ssub.s32 %s15, 2
    $region92: #{tpu_custom_call.1} parent=5 // pred_fallthru
      _
  $region6: #{tpu_custom_call.1} parent=0 // loop_footer
    %s19 = sadd.s32 1, %s15
  $region7: #{tpu_custom_call.1} parent=0 // loop_footer_branch
    %14 = sbr.rel target = $region3
  $region8: #{tpu_custom_call.1} parent=0 // loop_exit
    _

</llo_original>
